<compile_context>
chip_gen: v5e
topology: v5e:2x2
jax: 0.10.0
libtpu: 0.0.40
codegen_flags: <defaults>
</compile_context>

<pallas_src>
import functools
import math

import jax
import jax.numpy as jnp
from jax.experimental import pallas as pl
from jax.experimental.pallas import tpu as pltpu


# Target rows of the packed (BB*T, ...) activation tile per grid step; sized to
# feed the 256-wide/deep v6e/v7x MXU (and >=128 for v5e) when T is small.
_PACK_TARGET_ROWS = 256


def _seq_conv_encoder_kernel(seq_len_ref, embed_ref, w1_ref, b1_ref,
                             wc_ref, bc_ref, out_ref, *, BB, T, norm_cons):
    """One grid step: BB packed sequences, (BB*T, E) embed -> (BB, C) feature."""
    M = BB * T
    C = w1_ref.shape[1]
    L = wc_ref.shape[0]
    gi = pl.program_id(0)

    # --- per-row masks from the scalar-prefetched lengths (SMEM) -------------
    # keep:    1 on valid (t < seq_len) rows, 0 on padded rows.
    # prev_ok: 0 on the first row of each packed sequence (no t-1 neighbour).
    # next_ok: 0 on the last row of each packed sequence (no t+1 neighbour).
    # Built with static per-sequence compares (no vector int div/mod needed).
    t_idx = jax.lax.broadcasted_iota(jnp.int32, (M, 1), 0)
    keep = jnp.zeros((M, 1), jnp.float32)
    prev_ok = jnp.ones((M, 1), jnp.float32)
    next_ok = jnp.ones((M, 1), jnp.float32)
    for bb in range(BB):
        start = bb * T
        local_t = t_idx - start
        in_seq = jnp.logical_and(local_t >= 0, local_t < T)
        sl = seq_len_ref[gi * BB + bb]
        keep = jnp.where(jnp.logical_and(in_seq, local_t < sl), 1.0, keep)
        prev_ok = jnp.where(local_t == 0, 0.0, prev_ok)
        next_ok = jnp.where(local_t == T - 1, 0.0, next_ok)

    # --- fc1: masked embed (bf16 DMA) -> (M, C) f32 --------------------------
    x = embed_ref[...] * keep.astype(jnp.bfloat16)          # exact: keep is 0/1
    # F.dropout -> identity (inference semantics)
    seq_feat = jnp.dot(x, w1_ref[...],
                       preferred_element_type=jnp.float32) + b1_ref[...]

    scale = jnp.float32(math.sqrt(norm_cons))

    # --- conv + GLU + residual stack -----------------------------------------
    # Static unroll (L = 4); tiles here are small.  For large T*C tiles this
    # should become lax.fori_loop over layers to bound vreg live ranges.
    for l in range(L):
        residual = seq_feat                                   # res_idx == 1, proj is None
        xm = seq_feat * keep                                  # masked_fill before conv
        xm_b = xm.astype(jnp.bfloat16)
        # K=3 SAME-conv neighbours via XLU sublane rolls; boundary masks zero
        # the implicit padding rows and any cross-sequence wrap in the tile.
        x_prev = (pltpu.roll(xm, shift=1, axis=0) * prev_ok).astype(jnp.bfloat16)
        x_next = (pltpu.roll(xm, shift=M - 1, axis=0) * next_ok).astype(jnp.bfloat16)
        # One fused MXU pass per layer: taps concatenated along K (3C) and both
        # GLU halves along N (2C).
        x_cat = jnp.concatenate([x_prev, xm_b, x_next], axis=-1)      # bf16 (M, 3C)
        y = jnp.dot(x_cat, wc_ref[l],
                    preferred_element_type=jnp.float32) + bc_ref[l]   # f32 (M, 2C)
        a = y[:, :C]
        gate = y[:, C:]
        # F.glu: a * sigmoid(gate); sigmoid via a single EUP tanh.
        glu = a * (0.5 * (jnp.tanh(0.5 * gate) + 1.0))
        seq_feat = (glu + residual) * scale

    # --- max over time per packed sequence: one lane-dense (BB, C) store -----
    # (Padded rows are included in the max, matching the PyTorch reference
    # seq_feat.transpose(1, 0).max(dim=1)[0].)
    maxes = [jnp.max(seq_feat[bb * T:(bb + 1) * T, :], axis=0, keepdims=True)
             for bb in range(BB)]
    out_ref[...] = jnp.concatenate(maxes, axis=0) if BB > 1 else maxes[0]


def init_params(key, embed_num, post_embed_num, embed_dim, out_dim,
                dropout=0.2, num_layers=4, kernel_size=3, padding_idx=0):
    k1, k2, k3, k4 = jax.random.split(key, 4)
    emb = 0.1 * jax.random.normal(k1, (embed_num, embed_dim), jnp.float32)
    emb = emb.at[padding_idx].set(0.0)
    # NOTE: the original PyTorch init quirk (`m.weight[None]` with padding_idx=None)
    # zeroes the entire positional table; we keep it non-zero so the add is exercised.
    pos = 0.1 * jax.random.normal(k2, (post_embed_num, embed_dim), jnp.float32)
    w1 = math.sqrt((1.0 - dropout) / embed_dim) * jax.random.normal(
        k3, (embed_dim, out_dim), jnp.float32)
    b1 = jnp.zeros((out_dim,), jnp.float32)
    conv_std = math.sqrt(4.0 * (1.0 - dropout) / (kernel_size * out_dim))
    conv_w = conv_std * jax.random.normal(
        k4, (num_layers, kernel_size, out_dim, 2 * out_dim), jnp.float32)
    conv_b = jnp.zeros((num_layers, 2 * out_dim), jnp.float32)
    # TODO(synk): fc2_l / fc3_l are created in __init__ but never used in forward(); omitted.
    return dict(emb=emb, pos=pos, w1=w1, b1=b1, conv_w=conv_w, conv_b=conv_b)


@functools.partial(jax.jit, static_argnames=("norm_cons",))
def seq_conv_encoder(seq_tokens, seq_len, params, norm_cons=0.5):
    B, T = seq_tokens.shape
    E = params["emb"].shape[1]
    C = params["w1"].shape[1]
    L, K = params["conv_w"].shape[:2]
    assert K == 3

    # Plain-JAX glue: embedding + positional gathers.
    positions = jnp.arange(T)
    embed = params["emb"][seq_tokens] + params["pos"][positions][None, :, :]  # (B, T, E)

    # Pack BB sequences per grid step so the matmul M-dim is MXU sized; pad the
    # batch with zero-length sequences to a multiple of BB.  (For large B this
    # also keeps the grid >= 2 so megacore sharding + pipelining stay active.)
    BB = max(1, min(B, _PACK_TARGET_ROWS // max(T, 1)))
    G = -(-B // BB)
    Bp = G * BB
    if Bp != B:
        embed = jnp.pad(embed, ((0, Bp - B), (0, 0), (0, 0)))
        seq_len = jnp.pad(seq_len, (0, Bp - B))            # length 0 -> fully masked
    embed = embed.astype(jnp.bfloat16).reshape(G, BB * T, E)   # bf16 halves the DMA stream
    seq_len = seq_len.astype(jnp.int32)

    # Weights: bf16 MXU operands, f32 biases.  Conv weights fused over the K=3
    # taps and both GLU halves -> one (3C, 2C) operand per layer.
    w1 = params["w1"].astype(jnp.bfloat16)                            # (E, C)
    b1 = params["b1"].reshape(1, C).astype(jnp.float32)               # (1, C)
    wc = params["conv_w"].reshape(L, K * C, 2 * C).astype(jnp.bfloat16)   # (L, 3C, 2C)
    bc = params["conv_b"].reshape(L, 1, 2 * C).astype(jnp.float32)        # (L, 1, 2C)

    kernel = functools.partial(_seq_conv_encoder_kernel, BB=BB, T=T,
                               norm_cons=norm_cons)

    flops = 2 * Bp * T * (E * C + L * (3 * C) * (2 * C))
    bytes_accessed = (embed.size * 2 + seq_len.size * 4 + w1.size * 2 + b1.size * 4
                      + wc.size * 2 + bc.size * 4 + Bp * C * 4)
    # Rough VMEM budget: double-buffered embed/out tiles, resident weights and
    # per-layer working temporaries.
    vmem_est = (2 * BB * T * E * 2 + 2 * BB * C * 4
                + 2 * (w1.size * 2 + b1.size * 4 + wc.size * 2 + bc.size * 4)
                + 12 * BB * T * C * 4 + 2 * BB * T * 3 * C * 2)
    vmem_limit = int(min(64 * 1024 * 1024, max(16 * 1024 * 1024, 2 * vmem_est)))

    out = pl.pallas_call(
        kernel,
        out_shape=jax.ShapeDtypeStruct((G, BB, C), jnp.float32),
        grid_spec=pltpu.PrefetchScalarGridSpec(
            num_scalar_prefetch=1,                                   # seq_len -> SMEM
            grid=(G,),
            in_specs=[
                pl.BlockSpec((None, BB * T, E), lambda g, sl: (g, 0, 0)),   # embed tile
                pl.BlockSpec((E, C), lambda g, sl: (0, 0)),                 # w1 (resident)
                pl.BlockSpec((1, C), lambda g, sl: (0, 0)),                 # b1
                pl.BlockSpec((L, K * C, 2 * C), lambda g, sl: (0, 0, 0)),   # fused conv W
                pl.BlockSpec((L, 1, 2 * C), lambda g, sl: (0, 0, 0)),       # fused conv b
            ],
            out_specs=pl.BlockSpec((None, BB, C), lambda g, sl: (g, 0, 0)),
        ),
        compiler_params=pltpu.CompilerParams(
            dimension_semantics=("parallel",),
            vmem_limit_bytes=vmem_limit),
        cost_estimate=pl.CostEstimate(
            flops=flops,
            transcendentals=Bp * T * C * L,
            bytes_accessed=bytes_accessed),
    )(seq_len, embed, w1, b1, wc, bc)
    return out.reshape(Bp, C)[:B]


def reference_forward(seq_tokens, seq_len, params, norm_cons=0.5):
    """Pure-JAX mirror of SeqConvEncoder.forward (eval mode, f32 HIGHEST)."""
    B, T = seq_tokens.shape
    C = params["w1"].shape[1]
    L, K = params["conv_w"].shape[:2]
    hi = jax.lax.Precision.HIGHEST

    pad = jnp.arange(T)[None, :] >= seq_len[:, None]                        # (B, T)
    embed = params["emb"][seq_tokens] + params["pos"][jnp.arange(T)][None]  # (B, T, E)
    embed = jnp.where(pad[..., None], 0.0, embed)
    seq_feat = jnp.einsum("bte,ec->btc", embed, params["w1"],
                          precision=hi) + params["b1"]
    seq_feat = jnp.transpose(seq_feat, (1, 0, 2))                           # (T, B, C)
    keep = jnp.transpose(~pad).astype(jnp.float32)[..., None]               # (T, B, 1)
    scale = math.sqrt(norm_cons)
    for l in range(L):
        residual = seq_feat
        x = seq_feat * keep
        xp = jnp.pad(x, ((K // 2, K // 2), (0, 0), (0, 0)))
        y = params["conv_b"][l][None, None, :]
        for k in range(K):
            y = y + jnp.einsum("tbc,co->tbo", xp[k:k + T],
                               params["conv_w"][l, k], precision=hi)
        a, g = y[..., :C], y[..., C:]
        seq_feat = (a * jax.nn.sigmoid(g) + residual) * scale
    return jnp.max(seq_feat, axis=0)                                        # (B, C)


if __name__ == "__main__":
    key = jax.random.PRNGKey(0)
    kp, kt = jax.random.split(key)

    B, T = 2, 8
    embed_num, post_embed_num, embed_dim, out_dim = 16, 16, 32, 128

    params = init_params(kp, embed_num, post_embed_num, embed_dim, out_dim)
    seq_tokens = jax.random.randint(kt, (B, T), 1, embed_num, dtype=jnp.int32)
    seq_len = jnp.array([T, 5], dtype=jnp.int32)   # second sequence is padded

    out = seq_conv_encoder(seq_tokens, seq_len, params)
    out = jax.block_until_ready(out)

    ref = reference_forward(seq_tokens, seq_len, params)
    assert out.shape == (B, out_dim)
    # bf16 MXU operands vs f32 HIGHEST reference (sigmoid is now exact tanh-based).
    assert jnp.allclose(out, ref, rtol=2e-2, atol=5e-3), \
        float(jnp.max(jnp.abs(out - ref)))

    print("KERNEL_OK")
</pallas_src>

<mosaic_0001>
module attributes {stable_mosaic.version = 11 : i64} {
  func.func @_seq_conv_encoder_kernel(%arg0: i32, %arg1: memref<2xi32, #tpu.memory_space<smem>>, %arg2: memref<1x16x32xbf16, #tpu.memory_space<vmem>>, %arg3: memref<32x128xbf16, #tpu.memory_space<vmem>>, %arg4: memref<1x128xf32, #tpu.memory_space<vmem>>, %arg5: memref<4x384x256xbf16, #tpu.memory_space<vmem>>, %arg6: memref<4x1x256xf32, #tpu.memory_space<vmem>>, %arg7: memref<1x2x128xf32, #tpu.memory_space<vmem>>) attributes {dimension_semantics = [#tpu.dimension_semantics<parallel>], iteration_bounds = array<i64: 1>, scalar_prefetch = 1 : i64, scratch_operands = 0 : i64, tpu.core_type = #tpu.core_type<tc>, window_params = [{transform_indices = @transform_0, window_bounds = array<i64: 1, 16, 32>}, {pipeline_mode = #tpu.pipeline_mode<synchronous>, transform_indices = @transform_1, window_bounds = array<i64: 32, 128>}, {pipeline_mode = #tpu.pipeline_mode<synchronous>, transform_indices = @transform_2, window_bounds = array<i64: 1, 128>}, {pipeline_mode = #tpu.pipeline_mode<synchronous>, transform_indices = @transform_3, window_bounds = array<i64: 4, 384, 256>}, {pipeline_mode = #tpu.pipeline_mode<synchronous>, transform_indices = @transform_4, window_bounds = array<i64: 4, 1, 256>}, {transform_indices = @transform_5, window_bounds = array<i64: 1, 2, 128>}]} {
    %0 = tpu.iota {dimensions = array<i32: 0>} : vector<16x1xi32>
    %cst = arith.constant 0.000000e+00 : f32
    %1 = vector.broadcast %cst : f32 to vector<16x1xf32>
    %cst_0 = arith.constant 1.000000e+00 : f32
    %2 = vector.broadcast %cst_0 : f32 to vector<16x1xf32>
    %cst_1 = arith.constant 1.000000e+00 : f32
    %3 = vector.broadcast %cst_1 : f32 to vector<16x1xf32>
    %c0_i32 = arith.constant 0 : i32
    %4 = vector.broadcast %c0_i32 : i32 to vector<16x1xi32>
    %5 = arith.subi %0, %4 : vector<16x1xi32>
    %c0_i32_2 = arith.constant 0 : i32
    %6 = vector.broadcast %c0_i32_2 : i32 to vector<16x1xi32>
    %7 = arith.cmpi sge, %5, %6 : vector<16x1xi32>
    %c8_i32 = arith.constant 8 : i32
    %8 = vector.broadcast %c8_i32 : i32 to vector<16x1xi32>
    %9 = arith.cmpi slt, %5, %8 : vector<16x1xi32>
    %10 = arith.andi %7, %9 : vector<16x1xi1>
    %c2_i32 = arith.constant 2 : i32
    %11 = arith.muli %arg0, %c2_i32 : i32
    %c0_i32_3 = arith.constant 0 : i32
    %12 = arith.addi %11, %c0_i32_3 : i32
    %13 = arith.index_cast %12 : i32 to index
    %14 = memref.load %arg1[%13] : memref<2xi32, #tpu.memory_space<smem>>
    %15 = vector.broadcast %14 : i32 to vector<16x1xi32>
    %16 = arith.cmpi slt, %5, %15 : vector<16x1xi32>
    %17 = arith.andi %10, %16 : vector<16x1xi1>
    %cst_4 = arith.constant 1.000000e+00 : f32
    %18 = vector.broadcast %cst_4 : f32 to vector<16x1xf32>
    %19 = arith.select %17, %18, %1 : vector<16x1xi1>, vector<16x1xf32>
    %c0_i32_5 = arith.constant 0 : i32
    %20 = vector.broadcast %c0_i32_5 : i32 to vector<16x1xi32>
    %21 = arith.cmpi eq, %5, %20 : vector<16x1xi32>
    %cst_6 = arith.constant 0.000000e+00 : f32
    %22 = vector.broadcast %cst_6 : f32 to vector<16x1xf32>
    %23 = arith.select %21, %22, %2 : vector<16x1xi1>, vector<16x1xf32>
    %c7_i32 = arith.constant 7 : i32
    %24 = vector.broadcast %c7_i32 : i32 to vector<16x1xi32>
    %25 = arith.cmpi eq, %5, %24 : vector<16x1xi32>
    %cst_7 = arith.constant 0.000000e+00 : f32
    %26 = vector.broadcast %cst_7 : f32 to vector<16x1xf32>
    %27 = arith.select %25, %26, %3 : vector<16x1xi1>, vector<16x1xf32>
    %c8_i32_8 = arith.constant 8 : i32
    %28 = vector.broadcast %c8_i32_8 : i32 to vector<16x1xi32>
    %29 = arith.subi %0, %28 : vector<16x1xi32>
    %c0_i32_9 = arith.constant 0 : i32
    %30 = vector.broadcast %c0_i32_9 : i32 to vector<16x1xi32>
    %31 = arith.cmpi sge, %29, %30 : vector<16x1xi32>
    %c8_i32_10 = arith.constant 8 : i32
    %32 = vector.broadcast %c8_i32_10 : i32 to vector<16x1xi32>
    %33 = arith.cmpi slt, %29, %32 : vector<16x1xi32>
    %34 = arith.andi %31, %33 : vector<16x1xi1>
    %c2_i32_11 = arith.constant 2 : i32
    %35 = arith.muli %arg0, %c2_i32_11 : i32
    %c1_i32 = arith.constant 1 : i32
    %36 = arith.addi %35, %c1_i32 : i32
    %37 = arith.index_cast %36 : i32 to index
    %38 = memref.load %arg1[%37] : memref<2xi32, #tpu.memory_space<smem>>
    %39 = vector.broadcast %38 : i32 to vector<16x1xi32>
    %40 = arith.cmpi slt, %29, %39 : vector<16x1xi32>
    %41 = arith.andi %34, %40 : vector<16x1xi1>
    %cst_12 = arith.constant 1.000000e+00 : f32
    %42 = vector.broadcast %cst_12 : f32 to vector<16x1xf32>
    %43 = arith.select %41, %42, %19 : vector<16x1xi1>, vector<16x1xf32>
    %c0_i32_13 = arith.constant 0 : i32
    %44 = vector.broadcast %c0_i32_13 : i32 to vector<16x1xi32>
    %45 = arith.cmpi eq, %29, %44 : vector<16x1xi32>
    %cst_14 = arith.constant 0.000000e+00 : f32
    %46 = vector.broadcast %cst_14 : f32 to vector<16x1xf32>
    %47 = arith.select %45, %46, %23 : vector<16x1xi1>, vector<16x1xf32>
    %c7_i32_15 = arith.constant 7 : i32
    %48 = vector.broadcast %c7_i32_15 : i32 to vector<16x1xi32>
    %49 = arith.cmpi eq, %29, %48 : vector<16x1xi32>
    %cst_16 = arith.constant 0.000000e+00 : f32
    %50 = vector.broadcast %cst_16 : f32 to vector<16x1xf32>
    %51 = arith.select %49, %50, %27 : vector<16x1xi1>, vector<16x1xf32>
    %c0 = arith.constant 0 : index
    %c0_17 = arith.constant 0 : index
    %c0_18 = arith.constant 0 : index
    %52 = vector.load %arg2[%c0, %c0_17, %c0_18] : memref<1x16x32xbf16, #tpu.memory_space<vmem>>, vector<1x16x32xbf16>
    %53 = vector.shape_cast %52 : vector<1x16x32xbf16> to vector<16x32xbf16>
    %54 = arith.truncf %43 : vector<16x1xf32> to vector<16x1xbf16>
    %55 = vector.broadcast %54 : vector<16x1xbf16> to vector<16x32xbf16>
    %56 = arith.mulf %53, %55 : vector<16x32xbf16>
    %c0_19 = arith.constant 0 : index
    %c0_20 = arith.constant 0 : index
    %57 = vector.load %arg3[%c0_19, %c0_20] : memref<32x128xbf16, #tpu.memory_space<vmem>>, vector<32x128xbf16>
    %cst_21 = arith.constant dense<0.000000e+00> : vector<16x128xf32>
    %58 = tpu.matmul %56, %57, %cst_21 {dimension_numbers = #tpu.dot_dimension_numbers<[1], [0], [0], [1], [0, 0, 1, 1], [], []>} : vector<16x32xbf16>, vector<32x128xbf16>, vector<16x128xf32> -> vector<16x128xf32>
    %c0_22 = arith.constant 0 : index
    %c0_23 = arith.constant 0 : index
    %59 = vector.load %arg4[%c0_22, %c0_23] : memref<1x128xf32, #tpu.memory_space<vmem>>, vector<1x128xf32>
    %60 = vector.broadcast %59 : vector<1x128xf32> to vector<16x128xf32>
    %61 = arith.addf %58, %60 : vector<16x128xf32>
    %62 = vector.broadcast %43 : vector<16x1xf32> to vector<16x128xf32>
    %63 = arith.mulf %61, %62 : vector<16x128xf32>
    %64 = arith.truncf %63 : vector<16x128xf32> to vector<16x128xbf16>
    %c1_i32_24 = arith.constant 1 : i32
    %65 = tpu.dynamic_rotate %63 by %c1_i32_24 dim 0 : vector<16x128xf32>, i32 -> vector<16x128xf32>
    %66 = vector.broadcast %47 : vector<16x1xf32> to vector<16x128xf32>
    %67 = arith.mulf %65, %66 : vector<16x128xf32>
    %68 = arith.truncf %67 : vector<16x128xf32> to vector<16x128xbf16>
    %c15_i32 = arith.constant 15 : i32
    %69 = tpu.dynamic_rotate %63 by %c15_i32 dim 0 : vector<16x128xf32>, i32 -> vector<16x128xf32>
    %70 = vector.broadcast %51 : vector<16x1xf32> to vector<16x128xf32>
    %71 = arith.mulf %69, %70 : vector<16x128xf32>
    %72 = arith.truncf %71 : vector<16x128xf32> to vector<16x128xbf16>
    %73 = tpu.concatenate %68, %64, %72 in 1 : vector<16x128xbf16>, vector<16x128xbf16>, vector<16x128xbf16> -> vector<16x384xbf16>
    %c0_25 = arith.constant 0 : index
    %c0_26 = arith.constant 0 : index
    %c0_27 = arith.constant 0 : index
    %74 = vector.load %arg5[%c0_25, %c0_26, %c0_27] : memref<4x384x256xbf16, #tpu.memory_space<vmem>>, vector<1x384x256xbf16>
    %75 = vector.shape_cast %74 : vector<1x384x256xbf16> to vector<384x256xbf16>
    %cst_28 = arith.constant dense<0.000000e+00> : vector<16x256xf32>
    %76 = tpu.matmul %73, %75, %cst_28 {dimension_numbers = #tpu.dot_dimension_numbers<[1], [0], [0], [1], [0, 0, 1, 1], [], []>} : vector<16x384xbf16>, vector<384x256xbf16>, vector<16x256xf32> -> vector<16x256xf32>
    %c0_29 = arith.constant 0 : index
    %c0_30 = arith.constant 0 : index
    %c0_31 = arith.constant 0 : index
    %77 = vector.load %arg6[%c0_29, %c0_30, %c0_31] : memref<4x1x256xf32, #tpu.memory_space<vmem>>, vector<1x1x256xf32>
    %78 = vector.shape_cast %77 : vector<1x1x256xf32> to vector<1x256xf32>
    %79 = vector.broadcast %78 : vector<1x256xf32> to vector<16x256xf32>
    %80 = arith.addf %76, %79 : vector<16x256xf32>
    %81 = vector.extract_strided_slice %80 {offsets = [0, 0], sizes = [16, 128], strides = [1, 1]} : vector<16x256xf32> to vector<16x128xf32>
    %82 = vector.extract_strided_slice %80 {offsets = [0, 128], sizes = [16, 128], strides = [1, 1]} : vector<16x256xf32> to vector<16x128xf32>
    %cst_32 = arith.constant 5.000000e-01 : f32
    %83 = vector.broadcast %cst_32 : f32 to vector<16x128xf32>
    %84 = arith.mulf %83, %82 : vector<16x128xf32>
    %85 = math.tanh %84 : vector<16x128xf32>
    %cst_33 = arith.constant 1.000000e+00 : f32
    %86 = vector.broadcast %cst_33 : f32 to vector<16x128xf32>
    %87 = arith.addf %85, %86 : vector<16x128xf32>
    %cst_34 = arith.constant 5.000000e-01 : f32
    %88 = vector.broadcast %cst_34 : f32 to vector<16x128xf32>
    %89 = arith.mulf %88, %87 : vector<16x128xf32>
    %90 = arith.mulf %81, %89 : vector<16x128xf32>
    %91 = arith.addf %90, %61 : vector<16x128xf32>
    %cst_35 = arith.constant 0.707106769 : f32
    %92 = vector.broadcast %cst_35 : f32 to vector<16x128xf32>
    %93 = arith.mulf %91, %92 : vector<16x128xf32>
    %94 = vector.broadcast %43 : vector<16x1xf32> to vector<16x128xf32>
    %95 = arith.mulf %93, %94 : vector<16x128xf32>
    %96 = arith.truncf %95 : vector<16x128xf32> to vector<16x128xbf16>
    %c1_i32_36 = arith.constant 1 : i32
    %97 = tpu.dynamic_rotate %95 by %c1_i32_36 dim 0 : vector<16x128xf32>, i32 -> vector<16x128xf32>
    %98 = vector.broadcast %47 : vector<16x1xf32> to vector<16x128xf32>
    %99 = arith.mulf %97, %98 : vector<16x128xf32>
    %100 = arith.truncf %99 : vector<16x128xf32> to vector<16x128xbf16>
    %c15_i32_37 = arith.constant 15 : i32
    %101 = tpu.dynamic_rotate %95 by %c15_i32_37 dim 0 : vector<16x128xf32>, i32 -> vector<16x128xf32>
    %102 = vector.broadcast %51 : vector<16x1xf32> to vector<16x128xf32>
    %103 = arith.mulf %101, %102 : vector<16x128xf32>
    %104 = arith.truncf %103 : vector<16x128xf32> to vector<16x128xbf16>
    %105 = tpu.concatenate %100, %96, %104 in 1 : vector<16x128xbf16>, vector<16x128xbf16>, vector<16x128xbf16> -> vector<16x384xbf16>
    %c1 = arith.constant 1 : index
    %c0_38 = arith.constant 0 : index
    %c0_39 = arith.constant 0 : index
    %106 = vector.load %arg5[%c1, %c0_38, %c0_39] : memref<4x384x256xbf16, #tpu.memory_space<vmem>>, vector<1x384x256xbf16>
    %107 = vector.shape_cast %106 : vector<1x384x256xbf16> to vector<384x256xbf16>
    %cst_40 = arith.constant dense<0.000000e+00> : vector<16x256xf32>
    %108 = tpu.matmul %105, %107, %cst_40 {dimension_numbers = #tpu.dot_dimension_numbers<[1], [0], [0], [1], [0, 0, 1, 1], [], []>} : vector<16x384xbf16>, vector<384x256xbf16>, vector<16x256xf32> -> vector<16x256xf32>
    %c1_41 = arith.constant 1 : index
    %c0_42 = arith.constant 0 : index
    %c0_43 = arith.constant 0 : index
    %109 = vector.load %arg6[%c1_41, %c0_42, %c0_43] : memref<4x1x256xf32, #tpu.memory_space<vmem>>, vector<1x1x256xf32>
    %110 = vector.shape_cast %109 : vector<1x1x256xf32> to vector<1x256xf32>
    %111 = vector.broadcast %110 : vector<1x256xf32> to vector<16x256xf32>
    %112 = arith.addf %108, %111 : vector<16x256xf32>
    %113 = vector.extract_strided_slice %112 {offsets = [0, 0], sizes = [16, 128], strides = [1, 1]} : vector<16x256xf32> to vector<16x128xf32>
    %114 = vector.extract_strided_slice %112 {offsets = [0, 128], sizes = [16, 128], strides = [1, 1]} : vector<16x256xf32> to vector<16x128xf32>
    %cst_44 = arith.constant 5.000000e-01 : f32
    %115 = vector.broadcast %cst_44 : f32 to vector<16x128xf32>
    %116 = arith.mulf %115, %114 : vector<16x128xf32>
    %117 = math.tanh %116 : vector<16x128xf32>
    %cst_45 = arith.constant 1.000000e+00 : f32
    %118 = vector.broadcast %cst_45 : f32 to vector<16x128xf32>
    %119 = arith.addf %117, %118 : vector<16x128xf32>
    %cst_46 = arith.constant 5.000000e-01 : f32
    %120 = vector.broadcast %cst_46 : f32 to vector<16x128xf32>
    %121 = arith.mulf %120, %119 : vector<16x128xf32>
    %122 = arith.mulf %113, %121 : vector<16x128xf32>
    %123 = arith.addf %122, %93 : vector<16x128xf32>
    %cst_47 = arith.constant 0.707106769 : f32
    %124 = vector.broadcast %cst_47 : f32 to vector<16x128xf32>
    %125 = arith.mulf %123, %124 : vector<16x128xf32>
    %126 = vector.broadcast %43 : vector<16x1xf32> to vector<16x128xf32>
    %127 = arith.mulf %125, %126 : vector<16x128xf32>
    %128 = arith.truncf %127 : vector<16x128xf32> to vector<16x128xbf16>
    %c1_i32_48 = arith.constant 1 : i32
    %129 = tpu.dynamic_rotate %127 by %c1_i32_48 dim 0 : vector<16x128xf32>, i32 -> vector<16x128xf32>
    %130 = vector.broadcast %47 : vector<16x1xf32> to vector<16x128xf32>
    %131 = arith.mulf %129, %130 : vector<16x128xf32>
    %132 = arith.truncf %131 : vector<16x128xf32> to vector<16x128xbf16>
    %c15_i32_49 = arith.constant 15 : i32
    %133 = tpu.dynamic_rotate %127 by %c15_i32_49 dim 0 : vector<16x128xf32>, i32 -> vector<16x128xf32>
    %134 = vector.broadcast %51 : vector<16x1xf32> to vector<16x128xf32>
    %135 = arith.mulf %133, %134 : vector<16x128xf32>
    %136 = arith.truncf %135 : vector<16x128xf32> to vector<16x128xbf16>
    %137 = tpu.concatenate %132, %128, %136 in 1 : vector<16x128xbf16>, vector<16x128xbf16>, vector<16x128xbf16> -> vector<16x384xbf16>
    %c2 = arith.constant 2 : index
    %c0_50 = arith.constant 0 : index
    %c0_51 = arith.constant 0 : index
    %138 = vector.load %arg5[%c2, %c0_50, %c0_51] : memref<4x384x256xbf16, #tpu.memory_space<vmem>>, vector<1x384x256xbf16>
    %139 = vector.shape_cast %138 : vector<1x384x256xbf16> to vector<384x256xbf16>
    %cst_52 = arith.constant dense<0.000000e+00> : vector<16x256xf32>
    %140 = tpu.matmul %137, %139, %cst_52 {dimension_numbers = #tpu.dot_dimension_numbers<[1], [0], [0], [1], [0, 0, 1, 1], [], []>} : vector<16x384xbf16>, vector<384x256xbf16>, vector<16x256xf32> -> vector<16x256xf32>
    %c2_53 = arith.constant 2 : index
    %c0_54 = arith.constant 0 : index
    %c0_55 = arith.constant 0 : index
    %141 = vector.load %arg6[%c2_53, %c0_54, %c0_55] : memref<4x1x256xf32, #tpu.memory_space<vmem>>, vector<1x1x256xf32>
    %142 = vector.shape_cast %141 : vector<1x1x256xf32> to vector<1x256xf32>
    %143 = vector.broadcast %142 : vector<1x256xf32> to vector<16x256xf32>
    %144 = arith.addf %140, %143 : vector<16x256xf32>
    %145 = vector.extract_strided_slice %144 {offsets = [0, 0], sizes = [16, 128], strides = [1, 1]} : vector<16x256xf32> to vector<16x128xf32>
    %146 = vector.extract_strided_slice %144 {offsets = [0, 128], sizes = [16, 128], strides = [1, 1]} : vector<16x256xf32> to vector<16x128xf32>
    %cst_56 = arith.constant 5.000000e-01 : f32
    %147 = vector.broadcast %cst_56 : f32 to vector<16x128xf32>
    %148 = arith.mulf %147, %146 : vector<16x128xf32>
    %149 = math.tanh %148 : vector<16x128xf32>
    %cst_57 = arith.constant 1.000000e+00 : f32
    %150 = vector.broadcast %cst_57 : f32 to vector<16x128xf32>
    %151 = arith.addf %149, %150 : vector<16x128xf32>
    %cst_58 = arith.constant 5.000000e-01 : f32
    %152 = vector.broadcast %cst_58 : f32 to vector<16x128xf32>
    %153 = arith.mulf %152, %151 : vector<16x128xf32>
    %154 = arith.mulf %145, %153 : vector<16x128xf32>
    %155 = arith.addf %154, %125 : vector<16x128xf32>
    %cst_59 = arith.constant 0.707106769 : f32
    %156 = vector.broadcast %cst_59 : f32 to vector<16x128xf32>
    %157 = arith.mulf %155, %156 : vector<16x128xf32>
    %158 = vector.broadcast %43 : vector<16x1xf32> to vector<16x128xf32>
    %159 = arith.mulf %157, %158 : vector<16x128xf32>
    %160 = arith.truncf %159 : vector<16x128xf32> to vector<16x128xbf16>
    %c1_i32_60 = arith.constant 1 : i32
    %161 = tpu.dynamic_rotate %159 by %c1_i32_60 dim 0 : vector<16x128xf32>, i32 -> vector<16x128xf32>
    %162 = vector.broadcast %47 : vector<16x1xf32> to vector<16x128xf32>
    %163 = arith.mulf %161, %162 : vector<16x128xf32>
    %164 = arith.truncf %163 : vector<16x128xf32> to vector<16x128xbf16>
    %c15_i32_61 = arith.constant 15 : i32
    %165 = tpu.dynamic_rotate %159 by %c15_i32_61 dim 0 : vector<16x128xf32>, i32 -> vector<16x128xf32>
    %166 = vector.broadcast %51 : vector<16x1xf32> to vector<16x128xf32>
    %167 = arith.mulf %165, %166 : vector<16x128xf32>
    %168 = arith.truncf %167 : vector<16x128xf32> to vector<16x128xbf16>
    %169 = tpu.concatenate %164, %160, %168 in 1 : vector<16x128xbf16>, vector<16x128xbf16>, vector<16x128xbf16> -> vector<16x384xbf16>
    %c3 = arith.constant 3 : index
    %c0_62 = arith.constant 0 : index
    %c0_63 = arith.constant 0 : index
    %170 = vector.load %arg5[%c3, %c0_62, %c0_63] : memref<4x384x256xbf16, #tpu.memory_space<vmem>>, vector<1x384x256xbf16>
    %171 = vector.shape_cast %170 : vector<1x384x256xbf16> to vector<384x256xbf16>
    %cst_64 = arith.constant dense<0.000000e+00> : vector<16x256xf32>
    %172 = tpu.matmul %169, %171, %cst_64 {dimension_numbers = #tpu.dot_dimension_numbers<[1], [0], [0], [1], [0, 0, 1, 1], [], []>} : vector<16x384xbf16>, vector<384x256xbf16>, vector<16x256xf32> -> vector<16x256xf32>
    %c3_65 = arith.constant 3 : index
    %c0_66 = arith.constant 0 : index
    %c0_67 = arith.constant 0 : index
    %173 = vector.load %arg6[%c3_65, %c0_66, %c0_67] : memref<4x1x256xf32, #tpu.memory_space<vmem>>, vector<1x1x256xf32>
    %174 = vector.shape_cast %173 : vector<1x1x256xf32> to vector<1x256xf32>
    %175 = vector.broadcast %174 : vector<1x256xf32> to vector<16x256xf32>
    %176 = arith.addf %172, %175 : vector<16x256xf32>
    %177 = vector.extract_strided_slice %176 {offsets = [0, 0], sizes = [16, 128], strides = [1, 1]} : vector<16x256xf32> to vector<16x128xf32>
    %178 = vector.extract_strided_slice %176 {offsets = [0, 128], sizes = [16, 128], strides = [1, 1]} : vector<16x256xf32> to vector<16x128xf32>
    %cst_68 = arith.constant 5.000000e-01 : f32
    %179 = vector.broadcast %cst_68 : f32 to vector<16x128xf32>
    %180 = arith.mulf %179, %178 : vector<16x128xf32>
    %181 = math.tanh %180 : vector<16x128xf32>
    %cst_69 = arith.constant 1.000000e+00 : f32
    %182 = vector.broadcast %cst_69 : f32 to vector<16x128xf32>
    %183 = arith.addf %181, %182 : vector<16x128xf32>
    %cst_70 = arith.constant 5.000000e-01 : f32
    %184 = vector.broadcast %cst_70 : f32 to vector<16x128xf32>
    %185 = arith.mulf %184, %183 : vector<16x128xf32>
    %186 = arith.mulf %177, %185 : vector<16x128xf32>
    %187 = arith.addf %186, %157 : vector<16x128xf32>
    %cst_71 = arith.constant 0.707106769 : f32
    %188 = vector.broadcast %cst_71 : f32 to vector<16x128xf32>
    %189 = arith.mulf %187, %188 : vector<16x128xf32>
    %190 = vector.extract_strided_slice %189 {offsets = [0, 0], sizes = [8, 128], strides = [1, 1]} : vector<16x128xf32> to vector<8x128xf32>
    %cst_72 = arith.constant dense<0xFF800000> : vector<128xf32>
    %191 = vector.multi_reduction <maximumf>, %190, %cst_72 [0] : vector<8x128xf32> to vector<128xf32>
    %192 = vector.shape_cast %191 : vector<128xf32> to vector<1x128xf32>
    %193 = vector.extract_strided_slice %189 {offsets = [8, 0], sizes = [8, 128], strides = [1, 1]} : vector<16x128xf32> to vector<8x128xf32>
    %cst_73 = arith.constant dense<0xFF800000> : vector<128xf32>
    %194 = vector.multi_reduction <maximumf>, %193, %cst_73 [0] : vector<8x128xf32> to vector<128xf32>
    %195 = vector.shape_cast %194 : vector<128xf32> to vector<1x128xf32>
    %196 = tpu.concatenate %192, %195 in 0 : vector<1x128xf32>, vector<1x128xf32> -> vector<2x128xf32>
    %c0_74 = arith.constant 0 : index
    %c0_75 = arith.constant 0 : index
    %c0_76 = arith.constant 0 : index
    %197 = vector.load %arg7[%c0_74, %c0_75, %c0_76] : memref<1x2x128xf32, #tpu.memory_space<vmem>>, vector<1x2x128xf32>
    %198 = vector.shape_cast %197 : vector<1x2x128xf32> to vector<2x128xf32>
    %199 = vector.shape_cast %196 : vector<2x128xf32> to vector<1x2x128xf32>
    tpu.vector_store %arg7[%c0_74, %c0_75, %c0_76], %199 {strides = array<i32>} : memref<1x2x128xf32, #tpu.memory_space<vmem>>, vector<1x2x128xf32>,
    return
  }
  func.func @transform_0(%arg0: i32, %arg1: memref<2xi32, #tpu.memory_space<smem>>) -> (i32, i32, i32) {
    %c0_i32 = arith.constant 0 : i32
    %c0_i32_0 = arith.constant 0 : i32
    %c0_i32_1 = arith.constant 0 : i32
    return %arg0, %c0_i32, %c0_i32_0 : i32, i32, i32
  }
  func.func @transform_1(%arg0: i32, %arg1: memref<2xi32, #tpu.memory_space<smem>>) -> (i32, i32) {
    %c0_i32 = arith.constant 0 : i32
    %c0_i32_0 = arith.constant 0 : i32
    %c0_i32_1 = arith.constant 0 : i32
    return %c0_i32, %c0_i32_0 : i32, i32
  }
  func.func @transform_2(%arg0: i32, %arg1: memref<2xi32, #tpu.memory_space<smem>>) -> (i32, i32) {
    %c0_i32 = arith.constant 0 : i32
    %c0_i32_0 = arith.constant 0 : i32
    %c0_i32_1 = arith.constant 0 : i32
    return %c0_i32, %c0_i32_0 : i32, i32
  }
  func.func @transform_3(%arg0: i32, %arg1: memref<2xi32, #tpu.memory_space<smem>>) -> (i32, i32, i32) {
    %c0_i32 = arith.constant 0 : i32
    %c0_i32_0 = arith.constant 0 : i32
    %c0_i32_1 = arith.constant 0 : i32
    %c0_i32_2 = arith.constant 0 : i32
    return %c0_i32, %c0_i32_0, %c0_i32_1 : i32, i32, i32
  }
  func.func @transform_4(%arg0: i32, %arg1: memref<2xi32, #tpu.memory_space<smem>>) -> (i32, i32, i32) {
    %c0_i32 = arith.constant 0 : i32
    %c0_i32_0 = arith.constant 0 : i32
    %c0_i32_1 = arith.constant 0 : i32
    %c0_i32_2 = arith.constant 0 : i32
    return %c0_i32, %c0_i32_0, %c0_i32_1 : i32, i32, i32
  }
  func.func @transform_5(%arg0: i32, %arg1: memref<2xi32, #tpu.memory_space<smem>>) -> (i32, i32, i32) {
    %c0_i32 = arith.constant 0 : i32
    %c0_i32_0 = arith.constant 0 : i32
    %c0_i32_1 = arith.constant 0 : i32
    return %arg0, %c0_i32, %c0_i32_0 : i32, i32, i32
  }
}

</mosaic_0001>

<llo_original>
// kernel: seq_conv_encoder.1
$region0: #{seq_conv_encoder.1}
  #allocation0 [shape = 'u32[]', space=smem, size = 0x4, offset = 0x4, fixed_abs, tag = 'smem constant byte address 0x4 - core index']
  #allocation1 [shape = 'u32[72,128]{1,0:T(1,128)}', space=vmem, size = 0x9000, scoped, tag = 'internal scratch']
  #allocation2 [shape = 's32[1]{0}', space=sflag, size = 0x4, scoped, tag = 'scoped memory for seq_conv_encoder.1']
  #allocation3 [shape = 'u8[512]{0}', space=smem, size = 0x200, scoped, tag = 'prefetched SMEM operand 0']
  %s0 = inlined_call_operand.vmem [shape: s32[2], index: 0, kind: input, shape index: {}]
  %s1 = inlined_call_operand.vmem [shape: bf16[1,16,32], index: 1, kind: input, shape index: {}]
  %s2 = inlined_call_operand.vmem [shape: bf16[32,128], index: 2, kind: input, shape index: {}]
  %s3 = inlined_call_operand.vmem [shape: f32[1,128], index: 3, kind: input, shape index: {}]
  %s4 = inlined_call_operand.vmem [shape: bf16[4,384,256], index: 4, kind: input, shape index: {}]
  %s5 = inlined_call_operand.vmem [shape: f32[4,1,256], index: 5, kind: input, shape index: {}]
  %s6 = inlined_call_operand.hbm [shape: f32[1,2,128], index: 6, kind: output, shape index: {}]
  %s7 = sld [smem:[#allocation0]]
  $region30: #{seq_conv_encoder.1} parent=0
    _
  %s9 = ssub.s32 1, %s7
  %s10 = scalar_select 0, %s9, %s7
  %s12 = sshll.u32 %s0, 4
  %s13 = int_to_ptr.vmem [resolvable:$true] %s12
  %15 = dma.vmem_to_smem %s13, 16, [#allocation3], [#allocation2]
  %17 = dma.done [#allocation2], 16
  %18 = sfence
  $region1: #{seq_conv_encoder.1} parent=0
    #allocation4 [shape = 'u8[1024]{0}', space=vmem, size = 0x400, scoped, tag = 'output window, operand 0, single buffered']
    #allocation5 [shape = 's32[1]{0}', space=sflag, size = 0x4, scoped, tag = 'scoped memory for seq_conv_encoder.1']
    %19 = vsyncpa [#allocation5], 0
    // Predicated region
    $region2: #{seq_conv_encoder.1} parent=1 // pred_check
      _
    $region3: #{seq_conv_encoder.1} parent=1 // pred_check_branch
      %21 = sbr.rel (0) target = $region5
    $region4: #{seq_conv_encoder.1} parent=1 // pred_region
      _
    $region5: #{seq_conv_encoder.1} parent=1 // pred_fallthru
      _
    // Predicated region
    $region6: #{seq_conv_encoder.1} parent=1 // pred_check
      _
    $region7: #{seq_conv_encoder.1} parent=1 // pred_check_branch
      %23 = sbr.rel (0) target = $region9
    $region8: #{seq_conv_encoder.1} parent=1 // pred_region
      _
    $region9: #{seq_conv_encoder.1} parent=1 // pred_fallthru
      _
    // Predicated region
    $region10: #{seq_conv_encoder.1} parent=1 // pred_check
      _
    $region11: #{seq_conv_encoder.1} parent=1 // pred_check_branch
      %25 = sbr.rel (0) target = $region13
    $region12: #{seq_conv_encoder.1} parent=1 // pred_region
      _
    $region13: #{seq_conv_encoder.1} parent=1 // pred_fallthru
      _
    // Predicated region
    $region14: #{seq_conv_encoder.1} parent=1 // pred_check
      _
    $region15: #{seq_conv_encoder.1} parent=1 // pred_check_branch
      %27 = sbr.rel (0) target = $region17
    $region16: #{seq_conv_encoder.1} parent=1 // pred_region
      _
    $region17: #{seq_conv_encoder.1} parent=1 // pred_fallthru
      _
    // Predicated region
    $region18: #{seq_conv_encoder.1} parent=1 // pred_check
      _
    $region19: #{seq_conv_encoder.1} parent=1 // pred_check_branch
      %29 = sbr.rel (0) target = $region21
    $region20: #{seq_conv_encoder.1} parent=1 // pred_region
      _
    $region21: #{seq_conv_encoder.1} parent=1 // pred_fallthru
      _
    %v31 = vlaneseq
    %v32 = vshrl.u32 %v31, 7
    %v33 = vadd.s32 %v32, 8
    %vm34 = vcmp.ge.s32.totalorder %v32, 0
    %vm35 = vcmp.ge.s32.totalorder %v33, 0
    %vm36 = vcmp.lt.s32.totalorder %v32, 8
    %vm37 = vcmp.lt.s32.totalorder %v33, 8
    %vm38 = vmand %vm34, %vm36
    %vm39 = vmand %vm35, %vm37
    %s40 = smul.u32 0, 2
    %s41 = sld [smem:[#allocation3 + %s40]]
    %v42 = vstv %s41
    %vm43 = vcmp.lt.s32.totalorder %v32, %v42
    %vm44 = vcmp.lt.s32.totalorder %v33, %v42
    %vm45 = vmand %vm38, %vm43
    %vm46 = vmand %vm39, %vm44
    %v47 = vsel %vm45, 1.0, 0.0
    %v48 = vsel %vm46, 1.0, 0.0
    %vm49 = vcmp.eq.s32.totalorder %v32, 0
    %vm50 = vcmp.eq.s32.totalorder %v33, 0
    %v51 = vsel %vm49, 0.0, 1.0
    %v52 = vsel %vm50, 0.0, 1.0
    %vm53 = vcmp.eq.s32.totalorder %v32, 7
    %vm54 = vcmp.eq.s32.totalorder %v33, 7
    %v55 = vsel %vm53, 0.0, 1.0
    %v56 = vsel %vm54, 0.0, 1.0
    %v57 = vsub.s32 %v32, 8
    %vm58 = vcmp.ge.s32.totalorder %v57, 0
    %vm59 = vcmp.lt.s32.totalorder %v57, 8
    %vm60 = vmand %vm58, %vm59
    %s61 = sadd.s32 %s40, 1
    %s62 = sld [smem:[#allocation3 + %s61]]
    %v63 = vstv %s62
    %vm64 = vcmp.lt.s32.totalorder %v57, %v63
    %vm65 = vcmp.lt.s32.totalorder %v32, %v63
    %vm66 = vmand %vm60, %vm64
    %vm67 = vmand %vm38, %vm65
    %v68 = vsel %vm66, 1.0, %v47
    %v69 = vsel %vm67, 1.0, %v48
    %vm70 = vcmp.eq.s32.totalorder %v57, 0
    %v71 = vsel %vm70, 0.0, %v51
    %v72 = vsel %vm49, 0.0, %v52
    %vm73 = vcmp.eq.s32.totalorder %v57, 7
    %v74 = vsel %vm73, 0.0, %v55
    %v75 = vsel %vm53, 0.0, %v56
    %v76 = vld [vmem:[%s1] sm:$0xf]
    %v77 = vld [vmem:[%s1 + $0x4] sm:$0xf]
    %v78 = vpack.c.bf16 %v68, %v68
    %v79 = vpack.c.bf16 %v69, %v69
    %v80 = vunpack.c.l.bf16 %v76
    %v81 = vunpack.c.l.bf16 %v77
    %v82 = vunpack.c.l.bf16 %v78
    %v83 = vunpack.c.l.bf16 %v79
    %v84 = vmul.f32 %v80, %v82
    %v85 = vmul.f32 %v81, %v83
    %v86 = vpack.c.bf16 %v85, %v84
    %v87 = vld [vmem:[%s2] sm:$0xf]
    %v88 = vld [vmem:[%s2 + $0x4] sm:$0xf]
    %v89 = vld [vmem:[%s2 + $0x8] sm:$0xf]
    %v90 = vld [vmem:[%s2 + $0xc] sm:$0xf]
    %v91 = vld [vmem:[%s3] sm:$0x1]
    %v93 = vperm.slane %v91, 0
    %v99 = vunpack.c.l.b16 %v87
    %v100 = vunpack.c.l.b16 %v88
    %v101 = vunpack.c.l.b16 %v89
    %v102 = vunpack.c.l.b16 %v90
    %v103 = vpack.c.b16 %v100, %v99
    %v104 = vpack.c.b16 %v102, %v101
    %vm107 = vcmask 261120
    %v109 = vsel %vm107, %v86, 0
    %111 = vmatpush.bf16.msra.mxu0 0
    %112 = vmatpush.bf16.msra.mxu0 0
    %113 = vmatpush.bf16.msra.mxu0 0
    %114 = vmatpush.bf16.msra.mxu0 0
    %115 = vmatpush.bf16.msra.mxu0 0
    %116 = vmatpush.bf16.msra.mxu0 0
    %117 = vmatpush.bf16.msra.mxu0 %v104
    %118 = vmatpush.bf16.msra.mxu0 %v103
    %119 = vmatmul.bf16.gmra.mxu0 %v109
    %v120 = vpop.f32.mrf.mxu0
    %v121 = vadd.f32 %v93, %v120
    %v122 = vpop.f32.mrf.mxu0
    %v123 = vadd.f32 %v93, %v122
    %124 = vdwg.mxu0
    %v125 = vmul.f32 %v121, %v68
    %v126 = vmul.f32 %v123, %v69
    %v127 = vpack.c.bf16 %v125, %v125
    %v128 = vpack.c.bf16 %v126, %v126
    %v129 = vrot.slane %v125, 7
    %v130 = vrot.slane %v126, 7
    %vm131 = vcmp.lt.s32.totalorder %v32, 1
    %v132 = vsel %vm131, %v129, %v130
    %v133 = vsel %vm131, %v130, %v129
    %v134 = vmul.f32 %v133, %v71
    %v135 = vmul.f32 %v132, %v72
    %v136 = vpack.c.bf16 %v134, %v134
    %v137 = vpack.c.bf16 %v135, %v135
    %v138 = vrot.slane %v125, 1
    %v139 = vrot.slane %v126, 1
    %vm140 = vcmp.lt.s32.totalorder %v32, 7
    %v141 = vsel %vm140, %v138, %v139
    %v142 = vsel %vm140, %v139, %v138
    %v143 = vmul.f32 %v141, %v74
    %v144 = vmul.f32 %v142, %v75
    %v145 = vpack.c.bf16 %v143, %v143
    %v146 = vpack.c.bf16 %v144, %v144
    %v149 = vunpack.c.l.b16 %v136
    %v150 = vunpack.c.l.b16 %v137
    %v151 = vpack.c.b16 %v150, %v149
    %v155 = vunpack.c.l.b16 %v127
    %v156 = vunpack.c.l.b16 %v128
    %v157 = vpack.c.b16 %v156, %v155
    %v161 = vunpack.c.l.b16 %v145
    %v162 = vunpack.c.l.b16 %v146
    %v163 = vpack.c.b16 %v162, %v161
    %v165 = vld [vmem:[%s4] sm:$0xff]
    %v166 = vld [vmem:[%s4 + $0x8] sm:$0xff]
    %v167 = vld [vmem:[%s4 + $0x10] sm:$0xff]
    %v168 = vld [vmem:[%s4 + $0x18] sm:$0xff]
    %v169 = vld [vmem:[%s4 + $0x20] sm:$0xff]
    %v170 = vld [vmem:[%s4 + $0x28] sm:$0xff]
    %v171 = vld [vmem:[%s4 + $0x30] sm:$0xff]
    %v172 = vld [vmem:[%s4 + $0x38] sm:$0xff]
    %v173 = vld [vmem:[%s4 + $0x40] sm:$0xff]
    %v174 = vld [vmem:[%s4 + $0x48] sm:$0xff]
    %v175 = vld [vmem:[%s4 + $0x50] sm:$0xff]
    %v176 = vld [vmem:[%s4 + $0x58] sm:$0xff]
    %v177 = vld [vmem:[%s4 + $0x60] sm:$0xff]
    %v178 = vld [vmem:[%s4 + $0x68] sm:$0xff]
    %v179 = vld [vmem:[%s4 + $0x70] sm:$0xff]
    %v180 = vld [vmem:[%s4 + $0x78] sm:$0xff]
    %v181 = vld [vmem:[%s4 + $0x80] sm:$0xff]
    %v182 = vld [vmem:[%s4 + $0x88] sm:$0xff]
    %v183 = vld [vmem:[%s4 + $0x90] sm:$0xff]
    %v184 = vld [vmem:[%s4 + $0x98] sm:$0xff]
    %v185 = vld [vmem:[%s4 + $0xa0] sm:$0xff]
    %v186 = vld [vmem:[%s4 + $0xa8] sm:$0xff]
    %v187 = vld [vmem:[%s4 + $0xb0] sm:$0xff]
    %v188 = vld [vmem:[%s4 + $0xb8] sm:$0xff]
    %v189 = vld [vmem:[%s4 + $0xc0] sm:$0xff]
    %v190 = vld [vmem:[%s4 + $0xc8] sm:$0xff]
    %v191 = vld [vmem:[%s4 + $0xd0] sm:$0xff]
    %v192 = vld [vmem:[%s4 + $0xd8] sm:$0xff]
    %v193 = vld [vmem:[%s4 + $0xe0] sm:$0xff]
    %v194 = vld [vmem:[%s4 + $0xe8] sm:$0xff]
    %v195 = vld [vmem:[%s4 + $0xf0] sm:$0xff]
    %v196 = vld [vmem:[%s4 + $0xf8] sm:$0xff]
    %v197 = vld [vmem:[%s4 + $0x100] sm:$0xff]
    %v198 = vld [vmem:[%s4 + $0x108] sm:$0xff]
    %v199 = vld [vmem:[%s4 + $0x110] sm:$0xff]
    %v200 = vld [vmem:[%s4 + $0x118] sm:$0xff]
    %v201 = vld [vmem:[%s4 + $0x120] sm:$0xff]
    %v202 = vld [vmem:[%s4 + $0x128] sm:$0xff]
    %v203 = vld [vmem:[%s4 + $0x130] sm:$0xff]
    %v204 = vld [vmem:[%s4 + $0x138] sm:$0xff]
    %v205 = vld [vmem:[%s4 + $0x140] sm:$0xff]
    %v206 = vld [vmem:[%s4 + $0x148] sm:$0xff]
    %v207 = vld [vmem:[%s4 + $0x150] sm:$0xff]
    %v208 = vld [vmem:[%s4 + $0x158] sm:$0xff]
    %v209 = vld [vmem:[%s4 + $0x160] sm:$0xff]
    %v210 = vld [vmem:[%s4 + $0x168] sm:$0xff]
    %v211 = vld [vmem:[%s4 + $0x170] sm:$0xff]
    %v212 = vld [vmem:[%s4 + $0x178] sm:$0xff]
    %v213 = vld [vmem:[%s5] sm:$0x3]
    %v215 = vperm.slane %v213, 0
    %v216 = vperm.slane %v213, 1
    %v267 = vunpack.c.l.b16 %v165
    %v268 = vunpack.c.h.b16 %v165
    %v269 = vunpack.c.l.b16 %v166
    %v270 = vunpack.c.h.b16 %v166
    %v271 = vunpack.c.l.b16 %v167
    %v272 = vunpack.c.h.b16 %v167
    %v273 = vunpack.c.l.b16 %v168
    %v274 = vunpack.c.h.b16 %v168
    %v275 = vunpack.c.l.b16 %v169
    %v276 = vunpack.c.h.b16 %v169
    %v277 = vunpack.c.l.b16 %v170
    %v278 = vunpack.c.h.b16 %v170
    %v279 = vunpack.c.l.b16 %v171
    %v280 = vunpack.c.h.b16 %v171
    %v281 = vunpack.c.l.b16 %v172
    %v282 = vunpack.c.h.b16 %v172
    %v283 = vunpack.c.l.b16 %v173
    %v284 = vunpack.c.h.b16 %v173
    %v285 = vunpack.c.l.b16 %v174
    %v286 = vunpack.c.h.b16 %v174
    %v287 = vunpack.c.l.b16 %v175
    %v288 = vunpack.c.h.b16 %v175
    %v289 = vunpack.c.l.b16 %v176
    %v290 = vunpack.c.h.b16 %v176
    %v291 = vunpack.c.l.b16 %v177
    %v292 = vunpack.c.h.b16 %v177
    %v293 = vunpack.c.l.b16 %v178
    %v294 = vunpack.c.h.b16 %v178
    %v295 = vunpack.c.l.b16 %v179
    %v296 = vunpack.c.h.b16 %v179
    %v297 = vunpack.c.l.b16 %v180
    %v298 = vunpack.c.h.b16 %v180
    %v299 = vunpack.c.l.b16 %v181
    %v300 = vunpack.c.h.b16 %v181
    %v301 = vunpack.c.l.b16 %v182
    %v302 = vunpack.c.h.b16 %v182
    %v303 = vunpack.c.l.b16 %v183
    %v304 = vunpack.c.h.b16 %v183
    %v305 = vunpack.c.l.b16 %v184
    %v306 = vunpack.c.h.b16 %v184
    %v307 = vunpack.c.l.b16 %v185
    %v308 = vunpack.c.h.b16 %v185
    %v309 = vunpack.c.l.b16 %v186
    %v310 = vunpack.c.h.b16 %v186
    %v311 = vunpack.c.l.b16 %v187
    %v312 = vunpack.c.h.b16 %v187
    %v313 = vunpack.c.l.b16 %v188
    %v314 = vunpack.c.h.b16 %v188
    %v315 = vunpack.c.l.b16 %v189
    %v316 = vunpack.c.h.b16 %v189
    %v317 = vunpack.c.l.b16 %v190
    %v318 = vunpack.c.h.b16 %v190
    %v319 = vunpack.c.l.b16 %v191
    %v320 = vunpack.c.h.b16 %v191
    %v321 = vunpack.c.l.b16 %v192
    %v322 = vunpack.c.h.b16 %v192
    %v323 = vunpack.c.l.b16 %v193
    %v324 = vunpack.c.h.b16 %v193
    %v325 = vunpack.c.l.b16 %v194
    %v326 = vunpack.c.h.b16 %v194
    %v327 = vunpack.c.l.b16 %v195
    %v328 = vunpack.c.h.b16 %v195
    %v329 = vunpack.c.l.b16 %v196
    %v330 = vunpack.c.h.b16 %v196
    %v331 = vunpack.c.l.b16 %v197
    %v332 = vunpack.c.h.b16 %v197
    %v333 = vunpack.c.l.b16 %v198
    %v334 = vunpack.c.h.b16 %v198
    %v335 = vunpack.c.l.b16 %v199
    %v336 = vunpack.c.h.b16 %v199
    %v337 = vunpack.c.l.b16 %v200
    %v338 = vunpack.c.h.b16 %v200
    %v339 = vunpack.c.l.b16 %v201
    %v340 = vunpack.c.h.b16 %v201
    %v341 = vunpack.c.l.b16 %v202
    %v342 = vunpack.c.h.b16 %v202
    %v343 = vunpack.c.l.b16 %v203
    %v344 = vunpack.c.h.b16 %v203
    %v345 = vunpack.c.l.b16 %v204
    %v346 = vunpack.c.h.b16 %v204
    %v347 = vunpack.c.l.b16 %v205
    %v348 = vunpack.c.h.b16 %v205
    %v349 = vunpack.c.l.b16 %v206
    %v350 = vunpack.c.h.b16 %v206
    %v351 = vunpack.c.l.b16 %v207
    %v352 = vunpack.c.h.b16 %v207
    %v353 = vunpack.c.l.b16 %v208
    %v354 = vunpack.c.h.b16 %v208
    %v355 = vunpack.c.l.b16 %v209
    %v356 = vunpack.c.h.b16 %v209
    %v357 = vunpack.c.l.b16 %v210
    %v358 = vunpack.c.h.b16 %v210
    %v359 = vunpack.c.l.b16 %v211
    %v360 = vunpack.c.h.b16 %v211
    %v361 = vunpack.c.l.b16 %v212
    %v362 = vunpack.c.h.b16 %v212
    %v363 = vpack.c.b16 %v269, %v267
    %v364 = vpack.c.b16 %v270, %v268
    %v365 = vpack.c.b16 %v273, %v271
    %v366 = vpack.c.b16 %v274, %v272
    %v367 = vpack.c.b16 %v277, %v275
    %v368 = vpack.c.b16 %v278, %v276
    %v369 = vpack.c.b16 %v281, %v279
    %v370 = vpack.c.b16 %v282, %v280
    %v371 = vpack.c.b16 %v285, %v283
    %v372 = vpack.c.b16 %v286, %v284
    %v373 = vpack.c.b16 %v289, %v287
    %v374 = vpack.c.b16 %v290, %v288
    %v375 = vpack.c.b16 %v293, %v291
    %v376 = vpack.c.b16 %v294, %v292
    %v377 = vpack.c.b16 %v297, %v295
    %v378 = vpack.c.b16 %v298, %v296
    %v379 = vpack.c.b16 %v301, %v299
    %v380 = vpack.c.b16 %v302, %v300
    %v381 = vpack.c.b16 %v305, %v303
    %v382 = vpack.c.b16 %v306, %v304
    %v383 = vpack.c.b16 %v309, %v307
    %v384 = vpack.c.b16 %v310, %v308
    %v385 = vpack.c.b16 %v313, %v311
    %v386 = vpack.c.b16 %v314, %v312
    %v387 = vpack.c.b16 %v317, %v315
    %v388 = vpack.c.b16 %v318, %v316
    %v389 = vpack.c.b16 %v321, %v319
    %v390 = vpack.c.b16 %v322, %v320
    %v391 = vpack.c.b16 %v325, %v323
    %v392 = vpack.c.b16 %v326, %v324
    %v393 = vpack.c.b16 %v329, %v327
    %v394 = vpack.c.b16 %v330, %v328
    %v395 = vpack.c.b16 %v333, %v331
    %v396 = vpack.c.b16 %v334, %v332
    %v397 = vpack.c.b16 %v337, %v335
    %v398 = vpack.c.b16 %v338, %v336
    %v399 = vpack.c.b16 %v341, %v339
    %v400 = vpack.c.b16 %v342, %v340
    %v401 = vpack.c.b16 %v345, %v343
    %v402 = vpack.c.b16 %v346, %v344
    %v403 = vpack.c.b16 %v349, %v347
    %v404 = vpack.c.b16 %v350, %v348
    %v405 = vpack.c.b16 %v353, %v351
    %v406 = vpack.c.b16 %v354, %v352
    %v407 = vpack.c.b16 %v357, %v355
    %v408 = vpack.c.b16 %v358, %v356
    %v409 = vpack.c.b16 %v361, %v359
    %v410 = vpack.c.b16 %v362, %v360
    %459 = vmatpush.bf16.msra.mxu0 %v377
    %460 = vmatpush.bf16.msra.mxu0 %v375
    %461 = vmatpush.bf16.msra.mxu0 %v373
    %462 = vmatpush.bf16.msra.mxu0 %v371
    %463 = vmatpush.bf16.msra.mxu0 %v369
    %464 = vmatpush.bf16.msra.mxu0 %v367
    %465 = vmatpush.bf16.msra.mxu0 %v365
    %466 = vmatpush.bf16.msra.mxu0 %v363
    %467 = vmatmul.bf16.gmra.mxu0 %v151
    %v468 = vpop.f32.mrf.mxu0
    %v469 = vadd.f32 %v215, %v468
    %v470 = vpop.f32.mrf.mxu0
    %v471 = vadd.f32 %v215, %v470
    %472 = vdwg.mxu0
    %473 = vmatpush.bf16.msra.mxu0 %v393
    %474 = vmatpush.bf16.msra.mxu0 %v391
    %475 = vmatpush.bf16.msra.mxu0 %v389
    %476 = vmatpush.bf16.msra.mxu0 %v387
    %477 = vmatpush.bf16.msra.mxu0 %v385
    %478 = vmatpush.bf16.msra.mxu0 %v383
    %479 = vmatpush.bf16.msra.mxu0 %v381
    %480 = vmatpush.bf16.msra.mxu0 %v379
    %481 = vmatmul.bf16.gmra.mxu0 %v157
    %v482 = vpop.f32.mrf.mxu0
    %v483 = vadd.f32 %v469, %v482
    %v484 = vpop.f32.mrf.mxu0
    %v485 = vadd.f32 %v471, %v484
    %486 = vdwg.mxu0
    %487 = vmatpush.bf16.msra.mxu0 %v409
    %488 = vmatpush.bf16.msra.mxu0 %v407
    %489 = vmatpush.bf16.msra.mxu0 %v405
    %490 = vmatpush.bf16.msra.mxu0 %v403
    %491 = vmatpush.bf16.msra.mxu0 %v401
    %492 = vmatpush.bf16.msra.mxu0 %v399
    %493 = vmatpush.bf16.msra.mxu0 %v397
    %494 = vmatpush.bf16.msra.mxu0 %v395
    %495 = vmatmul.bf16.gmra.mxu0 %v163
    %v496 = vpop.f32.mrf.mxu0
    %v497 = vadd.f32 %v483, %v496
    %v498 = vpop.f32.mrf.mxu0
    %v499 = vadd.f32 %v485, %v498
    %500 = vdwg.mxu0
    %501 = vmatpush.bf16.msra.mxu0 %v378
    %502 = vmatpush.bf16.msra.mxu0 %v376
    %503 = vmatpush.bf16.msra.mxu0 %v374
    %504 = vmatpush.bf16.msra.mxu0 %v372
    %505 = vmatpush.bf16.msra.mxu0 %v370
    %506 = vmatpush.bf16.msra.mxu0 %v368
    %507 = vmatpush.bf16.msra.mxu0 %v366
    %508 = vmatpush.bf16.msra.mxu0 %v364
    %509 = vmatmul.bf16.gmra.mxu0 %v151
    %v510 = vpop.f32.mrf.mxu0
    %v511 = vadd.f32 %v216, %v510
    %v512 = vpop.f32.mrf.mxu0
    %v513 = vadd.f32 %v216, %v512
    %514 = vdwg.mxu0
    %515 = vmatpush.bf16.msra.mxu0 %v394
    %516 = vmatpush.bf16.msra.mxu0 %v392
    %517 = vmatpush.bf16.msra.mxu0 %v390
    %518 = vmatpush.bf16.msra.mxu0 %v388
    %519 = vmatpush.bf16.msra.mxu0 %v386
    %520 = vmatpush.bf16.msra.mxu0 %v384
    %521 = vmatpush.bf16.msra.mxu0 %v382
    %522 = vmatpush.bf16.msra.mxu0 %v380
    %523 = vmatmul.bf16.gmra.mxu0 %v157
    %v524 = vpop.f32.mrf.mxu0
    %v525 = vadd.f32 %v511, %v524
    %v526 = vpop.f32.mrf.mxu0
    %v527 = vadd.f32 %v513, %v526
    %528 = vdwg.mxu0
    %529 = vmatpush.bf16.msra.mxu0 %v410
    %530 = vmatpush.bf16.msra.mxu0 %v408
    %531 = vmatpush.bf16.msra.mxu0 %v406
    %532 = vmatpush.bf16.msra.mxu0 %v404
    %533 = vmatpush.bf16.msra.mxu0 %v402
    %534 = vmatpush.bf16.msra.mxu0 %v400
    %535 = vmatpush.bf16.msra.mxu0 %v398
    %536 = vmatpush.bf16.msra.mxu0 %v396
    %537 = vmatmul.bf16.gmra.mxu0 %v163
    %v538 = vpop.f32.mrf.mxu0
    %v539 = vadd.f32 %v525, %v538
    %v540 = vpop.f32.mrf.mxu0
    %v541 = vadd.f32 %v527, %v540
    %542 = vdwg.mxu0
    %v543 = vmul.f32 %v539, 0.5
    %v544 = vmul.f32 %v541, 0.5
    %v545 = vtanh.pop %v543
    %v546 = vtanh.pop %v544
    %v547 = vadd.f32 %v545, 1.0
    %v548 = vadd.f32 %v546, 1.0
    %v549 = vmul.f32 %v547, 0.5
    %v550 = vmul.f32 %v548, 0.5
    %v551 = vmul.f32 %v497, %v549
    %v552 = vmul.f32 %v499, %v550
    %v553 = vadd.f32 %v551, %v121
    %v554 = vadd.f32 %v552, %v123
    %v555 = vmul.f32 %v553, 0.70710677
    %v556 = vmul.f32 %v554, 0.70710677
    %v557 = vmul.f32 %v555, %v68
    %v558 = vmul.f32 %v556, %v69
    %v559 = vpack.c.bf16 %v557, %v557
    %v560 = vpack.c.bf16 %v558, %v558
    %v561 = vrot.slane %v557, 7
    %v562 = vrot.slane %v558, 7
    %v563 = vsel %vm131, %v561, %v562
    %v564 = vsel %vm131, %v562, %v561
    %v565 = vmul.f32 %v564, %v71
    %v566 = vmul.f32 %v563, %v72
    %v567 = vpack.c.bf16 %v565, %v565
    %v568 = vpack.c.bf16 %v566, %v566
    %v569 = vrot.slane %v557, 1
    %v570 = vrot.slane %v558, 1
    %v571 = vsel %vm140, %v569, %v570
    %v572 = vsel %vm140, %v570, %v569
    %v573 = vmul.f32 %v571, %v74
    %v574 = vmul.f32 %v572, %v75
    %v575 = vpack.c.bf16 %v573, %v573
    %v576 = vpack.c.bf16 %v574, %v574
    %v579 = vunpack.c.l.b16 %v567
    %v580 = vunpack.c.l.b16 %v568
    %v581 = vpack.c.b16 %v580, %v579
    %v585 = vunpack.c.l.b16 %v559
    %v586 = vunpack.c.l.b16 %v560
    %v587 = vpack.c.b16 %v586, %v585
    %v591 = vunpack.c.l.b16 %v575
    %v592 = vunpack.c.l.b16 %v576
    %v593 = vpack.c.b16 %v592, %v591
    %s595 = scalar_lea.vmem %s4, 384
    %v596 = vld [vmem:[%s595] sm:$0xff]
    %v597 = vld [vmem:[%s595 + $0x8] sm:$0xff]
    %v598 = vld [vmem:[%s595 + $0x10] sm:$0xff]
    %v599 = vld [vmem:[%s595 + $0x18] sm:$0xff]
    %v600 = vld [vmem:[%s595 + $0x20] sm:$0xff]
    %v601 = vld [vmem:[%s595 + $0x28] sm:$0xff]
    %v602 = vld [vmem:[%s595 + $0x30] sm:$0xff]
    %v603 = vld [vmem:[%s595 + $0x38] sm:$0xff]
    %v604 = vld [vmem:[%s595 + $0x40] sm:$0xff]
    %v605 = vld [vmem:[%s595 + $0x48] sm:$0xff]
    %v606 = vld [vmem:[%s595 + $0x50] sm:$0xff]
    %v607 = vld [vmem:[%s595 + $0x58] sm:$0xff]
    %v608 = vld [vmem:[%s595 + $0x60] sm:$0xff]
    %v609 = vld [vmem:[%s595 + $0x68] sm:$0xff]
    %v610 = vld [vmem:[%s595 + $0x70] sm:$0xff]
    %v611 = vld [vmem:[%s595 + $0x78] sm:$0xff]
    %v612 = vld [vmem:[%s595 + $0x80] sm:$0xff]
    %v613 = vld [vmem:[%s595 + $0x88] sm:$0xff]
    %v614 = vld [vmem:[%s595 + $0x90] sm:$0xff]
    %v615 = vld [vmem:[%s595 + $0x98] sm:$0xff]
    %v616 = vld [vmem:[%s595 + $0xa0] sm:$0xff]
    %v617 = vld [vmem:[%s595 + $0xa8] sm:$0xff]
    %v618 = vld [vmem:[%s595 + $0xb0] sm:$0xff]
    %v619 = vld [vmem:[%s595 + $0xb8] sm:$0xff]
    %v620 = vld [vmem:[%s595 + $0xc0] sm:$0xff]
    %v621 = vld [vmem:[%s595 + $0xc8] sm:$0xff]
    %v622 = vld [vmem:[%s595 + $0xd0] sm:$0xff]
    %v623 = vld [vmem:[%s595 + $0xd8] sm:$0xff]
    %v624 = vld [vmem:[%s595 + $0xe0] sm:$0xff]
    %v625 = vld [vmem:[%s595 + $0xe8] sm:$0xff]
    %v626 = vld [vmem:[%s595 + $0xf0] sm:$0xff]
    %v627 = vld [vmem:[%s595 + $0xf8] sm:$0xff]
    %v628 = vld [vmem:[%s595 + $0x100] sm:$0xff]
    %v629 = vld [vmem:[%s595 + $0x108] sm:$0xff]
    %v630 = vld [vmem:[%s595 + $0x110] sm:$0xff]
    %v631 = vld [vmem:[%s595 + $0x118] sm:$0xff]
    %v632 = vld [vmem:[%s595 + $0x120] sm:$0xff]
    %v633 = vld [vmem:[%s595 + $0x128] sm:$0xff]
    %v634 = vld [vmem:[%s595 + $0x130] sm:$0xff]
    %v635 = vld [vmem:[%s595 + $0x138] sm:$0xff]
    %v636 = vld [vmem:[%s595 + $0x140] sm:$0xff]
    %v637 = vld [vmem:[%s595 + $0x148] sm:$0xff]
    %v638 = vld [vmem:[%s595 + $0x150] sm:$0xff]
    %v639 = vld [vmem:[%s595 + $0x158] sm:$0xff]
    %v640 = vld [vmem:[%s595 + $0x160] sm:$0xff]
    %v641 = vld [vmem:[%s595 + $0x168] sm:$0xff]
    %v642 = vld [vmem:[%s595 + $0x170] sm:$0xff]
    %v643 = vld [vmem:[%s595 + $0x178] sm:$0xff]
    %s644 = scalar_lea.vmem %s5, 2
    %v645 = vld [vmem:[%s644] sm:$0x3]
    %v647 = vperm.slane %v645, 0
    %v648 = vperm.slane %v645, 1
    %v699 = vunpack.c.l.b16 %v596
    %v700 = vunpack.c.h.b16 %v596
    %v701 = vunpack.c.l.b16 %v597
    %v702 = vunpack.c.h.b16 %v597
    %v703 = vunpack.c.l.b16 %v598
    %v704 = vunpack.c.h.b16 %v598
    %v705 = vunpack.c.l.b16 %v599
    %v706 = vunpack.c.h.b16 %v599
    %v707 = vunpack.c.l.b16 %v600
    %v708 = vunpack.c.h.b16 %v600
    %v709 = vunpack.c.l.b16 %v601
    %v710 = vunpack.c.h.b16 %v601
    %v711 = vunpack.c.l.b16 %v602
    %v712 = vunpack.c.h.b16 %v602
    %v713 = vunpack.c.l.b16 %v603
    %v714 = vunpack.c.h.b16 %v603
    %v715 = vunpack.c.l.b16 %v604
    %v716 = vunpack.c.h.b16 %v604
    %v717 = vunpack.c.l.b16 %v605
    %v718 = vunpack.c.h.b16 %v605
    %v719 = vunpack.c.l.b16 %v606
    %v720 = vunpack.c.h.b16 %v606
    %v721 = vunpack.c.l.b16 %v607
    %v722 = vunpack.c.h.b16 %v607
    %v723 = vunpack.c.l.b16 %v608
    %v724 = vunpack.c.h.b16 %v608
    %v725 = vunpack.c.l.b16 %v609
    %v726 = vunpack.c.h.b16 %v609
    %v727 = vunpack.c.l.b16 %v610
    %v728 = vunpack.c.h.b16 %v610
    %v729 = vunpack.c.l.b16 %v611
    %v730 = vunpack.c.h.b16 %v611
    %v731 = vunpack.c.l.b16 %v612
    %v732 = vunpack.c.h.b16 %v612
    %v733 = vunpack.c.l.b16 %v613
    %v734 = vunpack.c.h.b16 %v613
    %v735 = vunpack.c.l.b16 %v614
    %v736 = vunpack.c.h.b16 %v614
    %v737 = vunpack.c.l.b16 %v615
    %v738 = vunpack.c.h.b16 %v615
    %v739 = vunpack.c.l.b16 %v616
    %v740 = vunpack.c.h.b16 %v616
    %v741 = vunpack.c.l.b16 %v617
    %v742 = vunpack.c.h.b16 %v617
    %v743 = vunpack.c.l.b16 %v618
    %v744 = vunpack.c.h.b16 %v618
    %v745 = vunpack.c.l.b16 %v619
    %v746 = vunpack.c.h.b16 %v619
    %v747 = vunpack.c.l.b16 %v620
    %v748 = vunpack.c.h.b16 %v620
    %v749 = vunpack.c.l.b16 %v621
    %v750 = vunpack.c.h.b16 %v621
    %v751 = vunpack.c.l.b16 %v622
    %v752 = vunpack.c.h.b16 %v622
    %v753 = vunpack.c.l.b16 %v623
    %v754 = vunpack.c.h.b16 %v623
    %v755 = vunpack.c.l.b16 %v624
    %v756 = vunpack.c.h.b16 %v624
    %v757 = vunpack.c.l.b16 %v625
    %v758 = vunpack.c.h.b16 %v625
    %v759 = vunpack.c.l.b16 %v626
    %v760 = vunpack.c.h.b16 %v626
    %v761 = vunpack.c.l.b16 %v627
    %v762 = vunpack.c.h.b16 %v627
    %v763 = vunpack.c.l.b16 %v628
    %v764 = vunpack.c.h.b16 %v628
    %v765 = vunpack.c.l.b16 %v629
    %v766 = vunpack.c.h.b16 %v629
    %v767 = vunpack.c.l.b16 %v630
    %v768 = vunpack.c.h.b16 %v630
    %v769 = vunpack.c.l.b16 %v631
    %v770 = vunpack.c.h.b16 %v631
    %v771 = vunpack.c.l.b16 %v632
    %v772 = vunpack.c.h.b16 %v632
    %v773 = vunpack.c.l.b16 %v633
    %v774 = vunpack.c.h.b16 %v633
    %v775 = vunpack.c.l.b16 %v634
    %v776 = vunpack.c.h.b16 %v634
    %v777 = vunpack.c.l.b16 %v635
    %v778 = vunpack.c.h.b16 %v635
    %v779 = vunpack.c.l.b16 %v636
    %v780 = vunpack.c.h.b16 %v636
    %v781 = vunpack.c.l.b16 %v637
    %v782 = vunpack.c.h.b16 %v637
    %v783 = vunpack.c.l.b16 %v638
    %v784 = vunpack.c.h.b16 %v638
    %v785 = vunpack.c.l.b16 %v639
    %v786 = vunpack.c.h.b16 %v639
    %v787 = vunpack.c.l.b16 %v640
    %v788 = vunpack.c.h.b16 %v640
    %v789 = vunpack.c.l.b16 %v641
    %v790 = vunpack.c.h.b16 %v641
    %v791 = vunpack.c.l.b16 %v642
    %v792 = vunpack.c.h.b16 %v642
    %v793 = vunpack.c.l.b16 %v643
    %v794 = vunpack.c.h.b16 %v643
    %v795 = vpack.c.b16 %v701, %v699
    %v796 = vpack.c.b16 %v702, %v700
    %v797 = vpack.c.b16 %v705, %v703
    %v798 = vpack.c.b16 %v706, %v704
    %v799 = vpack.c.b16 %v709, %v707
    %v800 = vpack.c.b16 %v710, %v708
    %v801 = vpack.c.b16 %v713, %v711
    %v802 = vpack.c.b16 %v714, %v712
    %v803 = vpack.c.b16 %v717, %v715
    %v804 = vpack.c.b16 %v718, %v716
    %v805 = vpack.c.b16 %v721, %v719
    %v806 = vpack.c.b16 %v722, %v720
    %v807 = vpack.c.b16 %v725, %v723
    %v808 = vpack.c.b16 %v726, %v724
    %v809 = vpack.c.b16 %v729, %v727
    %v810 = vpack.c.b16 %v730, %v728
    %v811 = vpack.c.b16 %v733, %v731
    %v812 = vpack.c.b16 %v734, %v732
    %v813 = vpack.c.b16 %v737, %v735
    %v814 = vpack.c.b16 %v738, %v736
    %v815 = vpack.c.b16 %v741, %v739
    %v816 = vpack.c.b16 %v742, %v740
    %v817 = vpack.c.b16 %v745, %v743
    %v818 = vpack.c.b16 %v746, %v744
    %v819 = vpack.c.b16 %v749, %v747
    %v820 = vpack.c.b16 %v750, %v748
    %v821 = vpack.c.b16 %v753, %v751
    %v822 = vpack.c.b16 %v754, %v752
    %v823 = vpack.c.b16 %v757, %v755
    %v824 = vpack.c.b16 %v758, %v756
    %v825 = vpack.c.b16 %v761, %v759
    %v826 = vpack.c.b16 %v762, %v760
    %v827 = vpack.c.b16 %v765, %v763
    %v828 = vpack.c.b16 %v766, %v764
    %v829 = vpack.c.b16 %v769, %v767
    %v830 = vpack.c.b16 %v770, %v768
    %v831 = vpack.c.b16 %v773, %v771
    %v832 = vpack.c.b16 %v774, %v772
    %v833 = vpack.c.b16 %v777, %v775
    %v834 = vpack.c.b16 %v778, %v776
    %v835 = vpack.c.b16 %v781, %v779
    %v836 = vpack.c.b16 %v782, %v780
    %v837 = vpack.c.b16 %v785, %v783
    %v838 = vpack.c.b16 %v786, %v784
    %v839 = vpack.c.b16 %v789, %v787
    %v840 = vpack.c.b16 %v790, %v788
    %v841 = vpack.c.b16 %v793, %v791
    %v842 = vpack.c.b16 %v794, %v792
    %891 = vmatpush.bf16.msra.mxu0 %v809
    %892 = vmatpush.bf16.msra.mxu0 %v807
    %893 = vmatpush.bf16.msra.mxu0 %v805
    %894 = vmatpush.bf16.msra.mxu0 %v803
    %895 = vmatpush.bf16.msra.mxu0 %v801
    %896 = vmatpush.bf16.msra.mxu0 %v799
    %897 = vmatpush.bf16.msra.mxu0 %v797
    %898 = vmatpush.bf16.msra.mxu0 %v795
    %899 = vmatmul.bf16.gmra.mxu0 %v581
    %v900 = vpop.f32.mrf.mxu0
    %v901 = vadd.f32 %v647, %v900
    %v902 = vpop.f32.mrf.mxu0
    %v903 = vadd.f32 %v647, %v902
    %904 = vdwg.mxu0
    %905 = vmatpush.bf16.msra.mxu0 %v825
    %906 = vmatpush.bf16.msra.mxu0 %v823
    %907 = vmatpush.bf16.msra.mxu0 %v821
    %908 = vmatpush.bf16.msra.mxu0 %v819
    %909 = vmatpush.bf16.msra.mxu0 %v817
    %910 = vmatpush.bf16.msra.mxu0 %v815
    %911 = vmatpush.bf16.msra.mxu0 %v813
    %912 = vmatpush.bf16.msra.mxu0 %v811
    %913 = vmatmul.bf16.gmra.mxu0 %v587
    %v914 = vpop.f32.mrf.mxu0
    %v915 = vadd.f32 %v901, %v914
    %v916 = vpop.f32.mrf.mxu0
    %v917 = vadd.f32 %v903, %v916
    %918 = vdwg.mxu0
    %919 = vmatpush.bf16.msra.mxu0 %v841
    %920 = vmatpush.bf16.msra.mxu0 %v839
    %921 = vmatpush.bf16.msra.mxu0 %v837
    %922 = vmatpush.bf16.msra.mxu0 %v835
    %923 = vmatpush.bf16.msra.mxu0 %v833
    %924 = vmatpush.bf16.msra.mxu0 %v831
    %925 = vmatpush.bf16.msra.mxu0 %v829
    %926 = vmatpush.bf16.msra.mxu0 %v827
    %927 = vmatmul.bf16.gmra.mxu0 %v593
    %v928 = vpop.f32.mrf.mxu0
    %v929 = vadd.f32 %v915, %v928
    %v930 = vpop.f32.mrf.mxu0
    %v931 = vadd.f32 %v917, %v930
    %932 = vdwg.mxu0
    %933 = vmatpush.bf16.msra.mxu0 %v810
    %934 = vmatpush.bf16.msra.mxu0 %v808
    %935 = vmatpush.bf16.msra.mxu0 %v806
    %936 = vmatpush.bf16.msra.mxu0 %v804
    %937 = vmatpush.bf16.msra.mxu0 %v802
    %938 = vmatpush.bf16.msra.mxu0 %v800
    %939 = vmatpush.bf16.msra.mxu0 %v798
    %940 = vmatpush.bf16.msra.mxu0 %v796
    %941 = vmatmul.bf16.gmra.mxu0 %v581
    %v942 = vpop.f32.mrf.mxu0
    %v943 = vadd.f32 %v648, %v942
    %v944 = vpop.f32.mrf.mxu0
    %v945 = vadd.f32 %v648, %v944
    %946 = vdwg.mxu0
    %947 = vmatpush.bf16.msra.mxu0 %v826
    %948 = vmatpush.bf16.msra.mxu0 %v824
    %949 = vmatpush.bf16.msra.mxu0 %v822
    %950 = vmatpush.bf16.msra.mxu0 %v820
    %951 = vmatpush.bf16.msra.mxu0 %v818
    %952 = vmatpush.bf16.msra.mxu0 %v816
    %953 = vmatpush.bf16.msra.mxu0 %v814
    %954 = vmatpush.bf16.msra.mxu0 %v812
    %955 = vmatmul.bf16.gmra.mxu0 %v587
    %v956 = vpop.f32.mrf.mxu0
    %v957 = vadd.f32 %v943, %v956
    %v958 = vpop.f32.mrf.mxu0
    %v959 = vadd.f32 %v945, %v958
    %960 = vdwg.mxu0
    %961 = vmatpush.bf16.msra.mxu0 %v842
    %962 = vmatpush.bf16.msra.mxu0 %v840
    %963 = vmatpush.bf16.msra.mxu0 %v838
    %964 = vmatpush.bf16.msra.mxu0 %v836
    %965 = vmatpush.bf16.msra.mxu0 %v834
    %966 = vmatpush.bf16.msra.mxu0 %v832
    %967 = vmatpush.bf16.msra.mxu0 %v830
    %968 = vmatpush.bf16.msra.mxu0 %v828
    %969 = vmatmul.bf16.gmra.mxu0 %v593
    %v970 = vpop.f32.mrf.mxu0
    %v971 = vadd.f32 %v957, %v970
    %v972 = vpop.f32.mrf.mxu0
    %v973 = vadd.f32 %v959, %v972
    %974 = vdwg.mxu0
    %v975 = vmul.f32 %v971, 0.5
    %v976 = vmul.f32 %v973, 0.5
    %v977 = vtanh.pop %v975
    %v978 = vtanh.pop %v976
    %v979 = vadd.f32 %v977, 1.0
    %v980 = vadd.f32 %v978, 1.0
    %v981 = vmul.f32 %v979, 0.5
    %v982 = vmul.f32 %v980, 0.5
    %v983 = vmul.f32 %v929, %v981
    %v984 = vmul.f32 %v931, %v982
    %v985 = vadd.f32 %v983, %v555
    %v986 = vadd.f32 %v984, %v556
    %v987 = vmul.f32 %v985, 0.70710677
    %v988 = vmul.f32 %v986, 0.70710677
    %v989 = vmul.f32 %v987, %v68
    %v990 = vmul.f32 %v988, %v69
    %v991 = vpack.c.bf16 %v989, %v989
    %v992 = vpack.c.bf16 %v990, %v990
    %v993 = vrot.slane %v989, 7
    %v994 = vrot.slane %v990, 7
    %v995 = vsel %vm131, %v993, %v994
    %v996 = vsel %vm131, %v994, %v993
    %v997 = vmul.f32 %v996, %v71
    %v998 = vmul.f32 %v995, %v72
    %v999 = vpack.c.bf16 %v997, %v997
    %v1000 = vpack.c.bf16 %v998, %v998
    %v1001 = vrot.slane %v989, 1
    %v1002 = vrot.slane %v990, 1
    %v1003 = vsel %vm140, %v1001, %v1002
    %v1004 = vsel %vm140, %v1002, %v1001
    %v1005 = vmul.f32 %v1003, %v74
    %v1006 = vmul.f32 %v1004, %v75
    %v1007 = vpack.c.bf16 %v1005, %v1005
    %v1008 = vpack.c.bf16 %v1006, %v1006
    %v1011 = vunpack.c.l.b16 %v999
    %v1012 = vunpack.c.l.b16 %v1000
    %v1013 = vpack.c.b16 %v1012, %v1011
    %v1017 = vunpack.c.l.b16 %v991
    %v1018 = vunpack.c.l.b16 %v992
    %v1019 = vpack.c.b16 %v1018, %v1017
    %v1023 = vunpack.c.l.b16 %v1007
    %v1024 = vunpack.c.l.b16 %v1008
    %v1025 = vpack.c.b16 %v1024, %v1023
    %s1027 = scalar_lea.vmem %s4, 768
    %v1028 = vld [vmem:[%s1027] sm:$0xff]
    %v1029 = vld [vmem:[%s1027 + $0x8] sm:$0xff]
    %v1030 = vld [vmem:[%s1027 + $0x10] sm:$0xff]
    %v1031 = vld [vmem:[%s1027 + $0x18] sm:$0xff]
    %v1032 = vld [vmem:[%s1027 + $0x20] sm:$0xff]
    %v1033 = vld [vmem:[%s1027 + $0x28] sm:$0xff]
    %v1034 = vld [vmem:[%s1027 + $0x30] sm:$0xff]
    %v1035 = vld [vmem:[%s1027 + $0x38] sm:$0xff]
    %v1036 = vld [vmem:[%s1027 + $0x40] sm:$0xff]
    %v1037 = vld [vmem:[%s1027 + $0x48] sm:$0xff]
    %v1038 = vld [vmem:[%s1027 + $0x50] sm:$0xff]
    %v1039 = vld [vmem:[%s1027 + $0x58] sm:$0xff]
    %v1040 = vld [vmem:[%s1027 + $0x60] sm:$0xff]
    %v1041 = vld [vmem:[%s1027 + $0x68] sm:$0xff]
    %v1042 = vld [vmem:[%s1027 + $0x70] sm:$0xff]
    %v1043 = vld [vmem:[%s1027 + $0x78] sm:$0xff]
    %v1044 = vld [vmem:[%s1027 + $0x80] sm:$0xff]
    %v1045 = vld [vmem:[%s1027 + $0x88] sm:$0xff]
    %v1046 = vld [vmem:[%s1027 + $0x90] sm:$0xff]
    %v1047 = vld [vmem:[%s1027 + $0x98] sm:$0xff]
    %v1048 = vld [vmem:[%s1027 + $0xa0] sm:$0xff]
    %v1049 = vld [vmem:[%s1027 + $0xa8] sm:$0xff]
    %v1050 = vld [vmem:[%s1027 + $0xb0] sm:$0xff]
    %v1051 = vld [vmem:[%s1027 + $0xb8] sm:$0xff]
    %v1052 = vld [vmem:[%s1027 + $0xc0] sm:$0xff]
    %v1053 = vld [vmem:[%s1027 + $0xc8] sm:$0xff]
    %v1054 = vld [vmem:[%s1027 + $0xd0] sm:$0xff]
    %v1055 = vld [vmem:[%s1027 + $0xd8] sm:$0xff]
    %v1056 = vld [vmem:[%s1027 + $0xe0] sm:$0xff]
    %v1057 = vld [vmem:[%s1027 + $0xe8] sm:$0xff]
    %v1058 = vld [vmem:[%s1027 + $0xf0] sm:$0xff]
    %v1059 = vld [vmem:[%s1027 + $0xf8] sm:$0xff]
    %v1060 = vld [vmem:[%s1027 + $0x100] sm:$0xff]
    %v1061 = vld [vmem:[%s1027 + $0x108] sm:$0xff]
    %v1062 = vld [vmem:[%s1027 + $0x110] sm:$0xff]
    %v1063 = vld [vmem:[%s1027 + $0x118] sm:$0xff]
    %v1064 = vld [vmem:[%s1027 + $0x120] sm:$0xff]
    %v1065 = vld [vmem:[%s1027 + $0x128] sm:$0xff]
    %v1066 = vld [vmem:[%s1027 + $0x130] sm:$0xff]
    %v1067 = vld [vmem:[%s1027 + $0x138] sm:$0xff]
    %v1068 = vld [vmem:[%s1027 + $0x140] sm:$0xff]
    %v1069 = vld [vmem:[%s1027 + $0x148] sm:$0xff]
    %v1070 = vld [vmem:[%s1027 + $0x150] sm:$0xff]
    %v1071 = vld [vmem:[%s1027 + $0x158] sm:$0xff]
    %v1072 = vld [vmem:[%s1027 + $0x160] sm:$0xff]
    %v1073 = vld [vmem:[%s1027 + $0x168] sm:$0xff]
    %v1074 = vld [vmem:[%s1027 + $0x170] sm:$0xff]
    %v1075 = vld [vmem:[%s1027 + $0x178] sm:$0xff]
    %s1076 = scalar_lea.vmem %s5, 4
    %v1077 = vld [vmem:[%s1076] sm:$0x3]
    %v1079 = vperm.slane %v1077, 0
    %v1080 = vperm.slane %v1077, 1
    %v1131 = vunpack.c.l.b16 %v1028
    %v1132 = vunpack.c.h.b16 %v1028
    %v1133 = vunpack.c.l.b16 %v1029
    %v1134 = vunpack.c.h.b16 %v1029
    %v1135 = vunpack.c.l.b16 %v1030
    %v1136 = vunpack.c.h.b16 %v1030
    %v1137 = vunpack.c.l.b16 %v1031
    %v1138 = vunpack.c.h.b16 %v1031
    %v1139 = vunpack.c.l.b16 %v1032
    %v1140 = vunpack.c.h.b16 %v1032
    %v1141 = vunpack.c.l.b16 %v1033
    %v1142 = vunpack.c.h.b16 %v1033
    %v1143 = vunpack.c.l.b16 %v1034
    %v1144 = vunpack.c.h.b16 %v1034
    %v1145 = vunpack.c.l.b16 %v1035
    %v1146 = vunpack.c.h.b16 %v1035
    %v1147 = vunpack.c.l.b16 %v1036
    %v1148 = vunpack.c.h.b16 %v1036
    %v1149 = vunpack.c.l.b16 %v1037
    %v1150 = vunpack.c.h.b16 %v1037
    %v1151 = vunpack.c.l.b16 %v1038
    %v1152 = vunpack.c.h.b16 %v1038
    %v1153 = vunpack.c.l.b16 %v1039
    %v1154 = vunpack.c.h.b16 %v1039
    %v1155 = vunpack.c.l.b16 %v1040
    %v1156 = vunpack.c.h.b16 %v1040
    %v1157 = vunpack.c.l.b16 %v1041
    %v1158 = vunpack.c.h.b16 %v1041
    %v1159 = vunpack.c.l.b16 %v1042
    %v1160 = vunpack.c.h.b16 %v1042
    %v1161 = vunpack.c.l.b16 %v1043
    %v1162 = vunpack.c.h.b16 %v1043
    %v1163 = vunpack.c.l.b16 %v1044
    %v1164 = vunpack.c.h.b16 %v1044
    %v1165 = vunpack.c.l.b16 %v1045
    %v1166 = vunpack.c.h.b16 %v1045
    %v1167 = vunpack.c.l.b16 %v1046
    %v1168 = vunpack.c.h.b16 %v1046
    %v1169 = vunpack.c.l.b16 %v1047
    %v1170 = vunpack.c.h.b16 %v1047
    %v1171 = vunpack.c.l.b16 %v1048
    %v1172 = vunpack.c.h.b16 %v1048
    %v1173 = vunpack.c.l.b16 %v1049
    %v1174 = vunpack.c.h.b16 %v1049
    %v1175 = vunpack.c.l.b16 %v1050
    %v1176 = vunpack.c.h.b16 %v1050
    %v1177 = vunpack.c.l.b16 %v1051
    %v1178 = vunpack.c.h.b16 %v1051
    %v1179 = vunpack.c.l.b16 %v1052
    %v1180 = vunpack.c.h.b16 %v1052
    %v1181 = vunpack.c.l.b16 %v1053
    %v1182 = vunpack.c.h.b16 %v1053
    %v1183 = vunpack.c.l.b16 %v1054
    %v1184 = vunpack.c.h.b16 %v1054
    %v1185 = vunpack.c.l.b16 %v1055
    %v1186 = vunpack.c.h.b16 %v1055
    %v1187 = vunpack.c.l.b16 %v1056
    %v1188 = vunpack.c.h.b16 %v1056
    %v1189 = vunpack.c.l.b16 %v1057
    %v1190 = vunpack.c.h.b16 %v1057
    %v1191 = vunpack.c.l.b16 %v1058
    %v1192 = vunpack.c.h.b16 %v1058
    %v1193 = vunpack.c.l.b16 %v1059
    %v1194 = vunpack.c.h.b16 %v1059
    %v1195 = vunpack.c.l.b16 %v1060
    %v1196 = vunpack.c.h.b16 %v1060
    %v1197 = vunpack.c.l.b16 %v1061
    %v1198 = vunpack.c.h.b16 %v1061
    %v1199 = vunpack.c.l.b16 %v1062
    %v1200 = vunpack.c.h.b16 %v1062
    %v1201 = vunpack.c.l.b16 %v1063
    %v1202 = vunpack.c.h.b16 %v1063
    %v1203 = vunpack.c.l.b16 %v1064
    %v1204 = vunpack.c.h.b16 %v1064
    %v1205 = vunpack.c.l.b16 %v1065
    %v1206 = vunpack.c.h.b16 %v1065
    %v1207 = vunpack.c.l.b16 %v1066
    %v1208 = vunpack.c.h.b16 %v1066
    %v1209 = vunpack.c.l.b16 %v1067
    %v1210 = vunpack.c.h.b16 %v1067
    %v1211 = vunpack.c.l.b16 %v1068
    %v1212 = vunpack.c.h.b16 %v1068
    %v1213 = vunpack.c.l.b16 %v1069
    %v1214 = vunpack.c.h.b16 %v1069
    %v1215 = vunpack.c.l.b16 %v1070
    %v1216 = vunpack.c.h.b16 %v1070
    %v1217 = vunpack.c.l.b16 %v1071
    %v1218 = vunpack.c.h.b16 %v1071
    %v1219 = vunpack.c.l.b16 %v1072
    %v1220 = vunpack.c.h.b16 %v1072
    %v1221 = vunpack.c.l.b16 %v1073
    %v1222 = vunpack.c.h.b16 %v1073
    %v1223 = vunpack.c.l.b16 %v1074
    %v1224 = vunpack.c.h.b16 %v1074
    %v1225 = vunpack.c.l.b16 %v1075
    %v1226 = vunpack.c.h.b16 %v1075
    %v1227 = vpack.c.b16 %v1133, %v1131
    %v1228 = vpack.c.b16 %v1134, %v1132
    %v1229 = vpack.c.b16 %v1137, %v1135
    %v1230 = vpack.c.b16 %v1138, %v1136
    %v1231 = vpack.c.b16 %v1141, %v1139
    %v1232 = vpack.c.b16 %v1142, %v1140
    %v1233 = vpack.c.b16 %v1145, %v1143
    %v1234 = vpack.c.b16 %v1146, %v1144
    %v1235 = vpack.c.b16 %v1149, %v1147
    %v1236 = vpack.c.b16 %v1150, %v1148
    %v1237 = vpack.c.b16 %v1153, %v1151
    %v1238 = vpack.c.b16 %v1154, %v1152
    %v1239 = vpack.c.b16 %v1157, %v1155
    %v1240 = vpack.c.b16 %v1158, %v1156
    %v1241 = vpack.c.b16 %v1161, %v1159
    %v1242 = vpack.c.b16 %v1162, %v1160
    %v1243 = vpack.c.b16 %v1165, %v1163
    %v1244 = vpack.c.b16 %v1166, %v1164
    %v1245 = vpack.c.b16 %v1169, %v1167
    %v1246 = vpack.c.b16 %v1170, %v1168
    %v1247 = vpack.c.b16 %v1173, %v1171
    %v1248 = vpack.c.b16 %v1174, %v1172
    %v1249 = vpack.c.b16 %v1177, %v1175
    %v1250 = vpack.c.b16 %v1178, %v1176
    %v1251 = vpack.c.b16 %v1181, %v1179
    %v1252 = vpack.c.b16 %v1182, %v1180
    %v1253 = vpack.c.b16 %v1185, %v1183
    %v1254 = vpack.c.b16 %v1186, %v1184
    %v1255 = vpack.c.b16 %v1189, %v1187
    %v1256 = vpack.c.b16 %v1190, %v1188
    %v1257 = vpack.c.b16 %v1193, %v1191
    %v1258 = vpack.c.b16 %v1194, %v1192
    %v1259 = vpack.c.b16 %v1197, %v1195
    %v1260 = vpack.c.b16 %v1198, %v1196
    %v1261 = vpack.c.b16 %v1201, %v1199
    %v1262 = vpack.c.b16 %v1202, %v1200
    %v1263 = vpack.c.b16 %v1205, %v1203
    %v1264 = vpack.c.b16 %v1206, %v1204
    %v1265 = vpack.c.b16 %v1209, %v1207
    %v1266 = vpack.c.b16 %v1210, %v1208
    %v1267 = vpack.c.b16 %v1213, %v1211
    %v1268 = vpack.c.b16 %v1214, %v1212
    %v1269 = vpack.c.b16 %v1217, %v1215
    %v1270 = vpack.c.b16 %v1218, %v1216
    %v1271 = vpack.c.b16 %v1221, %v1219
    %v1272 = vpack.c.b16 %v1222, %v1220
    %v1273 = vpack.c.b16 %v1225, %v1223
    %v1274 = vpack.c.b16 %v1226, %v1224
    %1323 = vmatpush.bf16.msra.mxu0 %v1241
    %1324 = vmatpush.bf16.msra.mxu0 %v1239
    %1325 = vmatpush.bf16.msra.mxu0 %v1237
    %1326 = vmatpush.bf16.msra.mxu0 %v1235
    %1327 = vmatpush.bf16.msra.mxu0 %v1233
    %1328 = vmatpush.bf16.msra.mxu0 %v1231
    %1329 = vmatpush.bf16.msra.mxu0 %v1229
    %1330 = vmatpush.bf16.msra.mxu0 %v1227
    %1331 = vmatmul.bf16.gmra.mxu0 %v1013
    %v1332 = vpop.f32.mrf.mxu0
    %v1333 = vadd.f32 %v1079, %v1332
    %v1334 = vpop.f32.mrf.mxu0
    %v1335 = vadd.f32 %v1079, %v1334
    %1336 = vdwg.mxu0
    %1337 = vmatpush.bf16.msra.mxu0 %v1257
    %1338 = vmatpush.bf16.msra.mxu0 %v1255
    %1339 = vmatpush.bf16.msra.mxu0 %v1253
    %1340 = vmatpush.bf16.msra.mxu0 %v1251
    %1341 = vmatpush.bf16.msra.mxu0 %v1249
    %1342 = vmatpush.bf16.msra.mxu0 %v1247
    %1343 = vmatpush.bf16.msra.mxu0 %v1245
    %1344 = vmatpush.bf16.msra.mxu0 %v1243
    %1345 = vmatmul.bf16.gmra.mxu0 %v1019
    %v1346 = vpop.f32.mrf.mxu0
    %v1347 = vadd.f32 %v1333, %v1346
    %v1348 = vpop.f32.mrf.mxu0
    %v1349 = vadd.f32 %v1335, %v1348
    %1350 = vdwg.mxu0
    %1351 = vmatpush.bf16.msra.mxu0 %v1273
    %1352 = vmatpush.bf16.msra.mxu0 %v1271
    %1353 = vmatpush.bf16.msra.mxu0 %v1269
    %1354 = vmatpush.bf16.msra.mxu0 %v1267
    %1355 = vmatpush.bf16.msra.mxu0 %v1265
    %1356 = vmatpush.bf16.msra.mxu0 %v1263
    %1357 = vmatpush.bf16.msra.mxu0 %v1261
    %1358 = vmatpush.bf16.msra.mxu0 %v1259
    %1359 = vmatmul.bf16.gmra.mxu0 %v1025
    %v1360 = vpop.f32.mrf.mxu0
    %v1361 = vadd.f32 %v1347, %v1360
    %v1362 = vpop.f32.mrf.mxu0
    %v1363 = vadd.f32 %v1349, %v1362
    %1364 = vdwg.mxu0
    %1365 = vmatpush.bf16.msra.mxu0 %v1242
    %1366 = vmatpush.bf16.msra.mxu0 %v1240
    %1367 = vmatpush.bf16.msra.mxu0 %v1238
    %1368 = vmatpush.bf16.msra.mxu0 %v1236
    %1369 = vmatpush.bf16.msra.mxu0 %v1234
    %1370 = vmatpush.bf16.msra.mxu0 %v1232
    %1371 = vmatpush.bf16.msra.mxu0 %v1230
    %1372 = vmatpush.bf16.msra.mxu0 %v1228
    %1373 = vmatmul.bf16.gmra.mxu0 %v1013
    %v1374 = vpop.f32.mrf.mxu0
    %v1375 = vadd.f32 %v1080, %v1374
    %v1376 = vpop.f32.mrf.mxu0
    %v1377 = vadd.f32 %v1080, %v1376
    %1378 = vdwg.mxu0
    %1379 = vmatpush.bf16.msra.mxu0 %v1258
    %1380 = vmatpush.bf16.msra.mxu0 %v1256
    %1381 = vmatpush.bf16.msra.mxu0 %v1254
    %1382 = vmatpush.bf16.msra.mxu0 %v1252
    %1383 = vmatpush.bf16.msra.mxu0 %v1250
    %1384 = vmatpush.bf16.msra.mxu0 %v1248
    %1385 = vmatpush.bf16.msra.mxu0 %v1246
    %1386 = vmatpush.bf16.msra.mxu0 %v1244
    %1387 = vmatmul.bf16.gmra.mxu0 %v1019
    %v1388 = vpop.f32.mrf.mxu0
    %v1389 = vadd.f32 %v1375, %v1388
    %v1390 = vpop.f32.mrf.mxu0
    %v1391 = vadd.f32 %v1377, %v1390
    %1392 = vdwg.mxu0
    %1393 = vmatpush.bf16.msra.mxu0 %v1274
    %1394 = vmatpush.bf16.msra.mxu0 %v1272
    %1395 = vmatpush.bf16.msra.mxu0 %v1270
    %1396 = vmatpush.bf16.msra.mxu0 %v1268
    %1397 = vmatpush.bf16.msra.mxu0 %v1266
    %1398 = vmatpush.bf16.msra.mxu0 %v1264
    %1399 = vmatpush.bf16.msra.mxu0 %v1262
    %1400 = vmatpush.bf16.msra.mxu0 %v1260
    %1401 = vmatmul.bf16.gmra.mxu0 %v1025
    %v1402 = vpop.f32.mrf.mxu0
    %v1403 = vadd.f32 %v1389, %v1402
    %v1404 = vpop.f32.mrf.mxu0
    %v1405 = vadd.f32 %v1391, %v1404
    %1406 = vdwg.mxu0
    %v1407 = vmul.f32 %v1403, 0.5
    %v1408 = vmul.f32 %v1405, 0.5
    %v1409 = vtanh.pop %v1407
    %v1410 = vtanh.pop %v1408
    %v1411 = vadd.f32 %v1409, 1.0
    %v1412 = vadd.f32 %v1410, 1.0
    %v1413 = vmul.f32 %v1411, 0.5
    %v1414 = vmul.f32 %v1412, 0.5
    %v1415 = vmul.f32 %v1361, %v1413
    %v1416 = vmul.f32 %v1363, %v1414
    %v1417 = vadd.f32 %v1415, %v987
    %v1418 = vadd.f32 %v1416, %v988
    %v1419 = vmul.f32 %v1417, 0.70710677
    %v1420 = vmul.f32 %v1418, 0.70710677
    %v1421 = vmul.f32 %v1419, %v68
    %v1422 = vmul.f32 %v1420, %v69
    %v1423 = vpack.c.bf16 %v1421, %v1421
    %v1424 = vpack.c.bf16 %v1422, %v1422
    %v1425 = vrot.slane %v1421, 7
    %v1426 = vrot.slane %v1422, 7
    %v1427 = vsel %vm131, %v1425, %v1426
    %v1428 = vsel %vm131, %v1426, %v1425
    %v1429 = vmul.f32 %v1428, %v71
    %v1430 = vmul.f32 %v1427, %v72
    %v1431 = vpack.c.bf16 %v1429, %v1429
    %v1432 = vpack.c.bf16 %v1430, %v1430
    %v1433 = vrot.slane %v1421, 1
    %v1434 = vrot.slane %v1422, 1
    %v1435 = vsel %vm140, %v1433, %v1434
    %v1436 = vsel %vm140, %v1434, %v1433
    %v1437 = vmul.f32 %v1435, %v74
    %v1438 = vmul.f32 %v1436, %v75
    %v1439 = vpack.c.bf16 %v1437, %v1437
    %v1440 = vpack.c.bf16 %v1438, %v1438
    %v1443 = vunpack.c.l.b16 %v1431
    %v1444 = vunpack.c.l.b16 %v1432
    %v1445 = vpack.c.b16 %v1444, %v1443
    %v1449 = vunpack.c.l.b16 %v1423
    %v1450 = vunpack.c.l.b16 %v1424
    %v1451 = vpack.c.b16 %v1450, %v1449
    %v1455 = vunpack.c.l.b16 %v1439
    %v1456 = vunpack.c.l.b16 %v1440
    %v1457 = vpack.c.b16 %v1456, %v1455
    %s1459 = scalar_lea.vmem %s4, 1152
    %v1460 = vld [vmem:[%s1459] sm:$0xff]
    %v1461 = vld [vmem:[%s1459 + $0x8] sm:$0xff]
    %v1462 = vld [vmem:[%s1459 + $0x10] sm:$0xff]
    %v1463 = vld [vmem:[%s1459 + $0x18] sm:$0xff]
    %v1464 = vld [vmem:[%s1459 + $0x20] sm:$0xff]
    %v1465 = vld [vmem:[%s1459 + $0x28] sm:$0xff]
    %v1466 = vld [vmem:[%s1459 + $0x30] sm:$0xff]
    %v1467 = vld [vmem:[%s1459 + $0x38] sm:$0xff]
    %v1468 = vld [vmem:[%s1459 + $0x40] sm:$0xff]
    %v1469 = vld [vmem:[%s1459 + $0x48] sm:$0xff]
    %v1470 = vld [vmem:[%s1459 + $0x50] sm:$0xff]
    %v1471 = vld [vmem:[%s1459 + $0x58] sm:$0xff]
    %v1472 = vld [vmem:[%s1459 + $0x60] sm:$0xff]
    %v1473 = vld [vmem:[%s1459 + $0x68] sm:$0xff]
    %v1474 = vld [vmem:[%s1459 + $0x70] sm:$0xff]
    %v1475 = vld [vmem:[%s1459 + $0x78] sm:$0xff]
    %v1476 = vld [vmem:[%s1459 + $0x80] sm:$0xff]
    %v1477 = vld [vmem:[%s1459 + $0x88] sm:$0xff]
    %v1478 = vld [vmem:[%s1459 + $0x90] sm:$0xff]
    %v1479 = vld [vmem:[%s1459 + $0x98] sm:$0xff]
    %v1480 = vld [vmem:[%s1459 + $0xa0] sm:$0xff]
    %v1481 = vld [vmem:[%s1459 + $0xa8] sm:$0xff]
    %v1482 = vld [vmem:[%s1459 + $0xb0] sm:$0xff]
    %v1483 = vld [vmem:[%s1459 + $0xb8] sm:$0xff]
    %v1484 = vld [vmem:[%s1459 + $0xc0] sm:$0xff]
    %v1485 = vld [vmem:[%s1459 + $0xc8] sm:$0xff]
    %v1486 = vld [vmem:[%s1459 + $0xd0] sm:$0xff]
    %v1487 = vld [vmem:[%s1459 + $0xd8] sm:$0xff]
    %v1488 = vld [vmem:[%s1459 + $0xe0] sm:$0xff]
    %v1489 = vld [vmem:[%s1459 + $0xe8] sm:$0xff]
    %v1490 = vld [vmem:[%s1459 + $0xf0] sm:$0xff]
    %v1491 = vld [vmem:[%s1459 + $0xf8] sm:$0xff]
    %v1492 = vld [vmem:[%s1459 + $0x100] sm:$0xff]
    %v1493 = vld [vmem:[%s1459 + $0x108] sm:$0xff]
    %v1494 = vld [vmem:[%s1459 + $0x110] sm:$0xff]
    %v1495 = vld [vmem:[%s1459 + $0x118] sm:$0xff]
    %v1496 = vld [vmem:[%s1459 + $0x120] sm:$0xff]
    %v1497 = vld [vmem:[%s1459 + $0x128] sm:$0xff]
    %v1498 = vld [vmem:[%s1459 + $0x130] sm:$0xff]
    %v1499 = vld [vmem:[%s1459 + $0x138] sm:$0xff]
    %v1500 = vld [vmem:[%s1459 + $0x140] sm:$0xff]
    %v1501 = vld [vmem:[%s1459 + $0x148] sm:$0xff]
    %v1502 = vld [vmem:[%s1459 + $0x150] sm:$0xff]
    %v1503 = vld [vmem:[%s1459 + $0x158] sm:$0xff]
    %v1504 = vld [vmem:[%s1459 + $0x160] sm:$0xff]
    %v1505 = vld [vmem:[%s1459 + $0x168] sm:$0xff]
    %v1506 = vld [vmem:[%s1459 + $0x170] sm:$0xff]
    %v1507 = vld [vmem:[%s1459 + $0x178] sm:$0xff]
    %s1508 = scalar_lea.vmem %s5, 6
    %v1509 = vld [vmem:[%s1508] sm:$0x3]
    %v1511 = vperm.slane %v1509, 0
    %v1512 = vperm.slane %v1509, 1
    %v1563 = vunpack.c.l.b16 %v1460
    %v1564 = vunpack.c.h.b16 %v1460
    %v1565 = vunpack.c.l.b16 %v1461
    %v1566 = vunpack.c.h.b16 %v1461
    %v1567 = vunpack.c.l.b16 %v1462
    %v1568 = vunpack.c.h.b16 %v1462
    %v1569 = vunpack.c.l.b16 %v1463
    %v1570 = vunpack.c.h.b16 %v1463
    %v1571 = vunpack.c.l.b16 %v1464
    %v1572 = vunpack.c.h.b16 %v1464
    %v1573 = vunpack.c.l.b16 %v1465
    %v1574 = vunpack.c.h.b16 %v1465
    %v1575 = vunpack.c.l.b16 %v1466
    %v1576 = vunpack.c.h.b16 %v1466
    %v1577 = vunpack.c.l.b16 %v1467
    %v1578 = vunpack.c.h.b16 %v1467
    %v1579 = vunpack.c.l.b16 %v1468
    %v1580 = vunpack.c.h.b16 %v1468
    %v1581 = vunpack.c.l.b16 %v1469
    %v1582 = vunpack.c.h.b16 %v1469
    %v1583 = vunpack.c.l.b16 %v1470
    %v1584 = vunpack.c.h.b16 %v1470
    %v1585 = vunpack.c.l.b16 %v1471
    %v1586 = vunpack.c.h.b16 %v1471
    %v1587 = vunpack.c.l.b16 %v1472
    %v1588 = vunpack.c.h.b16 %v1472
    %v1589 = vunpack.c.l.b16 %v1473
    %v1590 = vunpack.c.h.b16 %v1473
    %v1591 = vunpack.c.l.b16 %v1474
    %v1592 = vunpack.c.h.b16 %v1474
    %v1593 = vunpack.c.l.b16 %v1475
    %v1594 = vunpack.c.h.b16 %v1475
    %v1595 = vunpack.c.l.b16 %v1476
    %v1596 = vunpack.c.h.b16 %v1476
    %v1597 = vunpack.c.l.b16 %v1477
    %v1598 = vunpack.c.h.b16 %v1477
    %v1599 = vunpack.c.l.b16 %v1478
    %v1600 = vunpack.c.h.b16 %v1478
    %v1601 = vunpack.c.l.b16 %v1479
    %v1602 = vunpack.c.h.b16 %v1479
    %v1603 = vunpack.c.l.b16 %v1480
    %v1604 = vunpack.c.h.b16 %v1480
    %v1605 = vunpack.c.l.b16 %v1481
    %v1606 = vunpack.c.h.b16 %v1481
    %v1607 = vunpack.c.l.b16 %v1482
    %v1608 = vunpack.c.h.b16 %v1482
    %v1609 = vunpack.c.l.b16 %v1483
    %v1610 = vunpack.c.h.b16 %v1483
    %v1611 = vunpack.c.l.b16 %v1484
    %v1612 = vunpack.c.h.b16 %v1484
    %v1613 = vunpack.c.l.b16 %v1485
    %v1614 = vunpack.c.h.b16 %v1485
    %v1615 = vunpack.c.l.b16 %v1486
    %v1616 = vunpack.c.h.b16 %v1486
    %v1617 = vunpack.c.l.b16 %v1487
    %v1618 = vunpack.c.h.b16 %v1487
    %v1619 = vunpack.c.l.b16 %v1488
    %v1620 = vunpack.c.h.b16 %v1488
    %v1621 = vunpack.c.l.b16 %v1489
    %v1622 = vunpack.c.h.b16 %v1489
    %v1623 = vunpack.c.l.b16 %v1490
    %v1624 = vunpack.c.h.b16 %v1490
    %v1625 = vunpack.c.l.b16 %v1491
    %v1626 = vunpack.c.h.b16 %v1491
    %v1627 = vunpack.c.l.b16 %v1492
    %v1628 = vunpack.c.h.b16 %v1492
    %v1629 = vunpack.c.l.b16 %v1493
    %v1630 = vunpack.c.h.b16 %v1493
    %v1631 = vunpack.c.l.b16 %v1494
    %v1632 = vunpack.c.h.b16 %v1494
    %v1633 = vunpack.c.l.b16 %v1495
    %v1634 = vunpack.c.h.b16 %v1495
    %v1635 = vunpack.c.l.b16 %v1496
    %v1636 = vunpack.c.h.b16 %v1496
    %v1637 = vunpack.c.l.b16 %v1497
    %v1638 = vunpack.c.h.b16 %v1497
    %v1639 = vunpack.c.l.b16 %v1498
    %v1640 = vunpack.c.h.b16 %v1498
    %v1641 = vunpack.c.l.b16 %v1499
    %v1642 = vunpack.c.h.b16 %v1499
    %v1643 = vunpack.c.l.b16 %v1500
    %v1644 = vunpack.c.h.b16 %v1500
    %v1645 = vunpack.c.l.b16 %v1501
    %v1646 = vunpack.c.h.b16 %v1501
    %v1647 = vunpack.c.l.b16 %v1502
    %v1648 = vunpack.c.h.b16 %v1502
    %v1649 = vunpack.c.l.b16 %v1503
    %v1650 = vunpack.c.h.b16 %v1503
    %v1651 = vunpack.c.l.b16 %v1504
    %v1652 = vunpack.c.h.b16 %v1504
    %v1653 = vunpack.c.l.b16 %v1505
    %v1654 = vunpack.c.h.b16 %v1505
    %v1655 = vunpack.c.l.b16 %v1506
    %v1656 = vunpack.c.h.b16 %v1506
    %v1657 = vunpack.c.l.b16 %v1507
    %v1658 = vunpack.c.h.b16 %v1507
    %v1659 = vpack.c.b16 %v1565, %v1563
    %v1660 = vpack.c.b16 %v1566, %v1564
    %v1661 = vpack.c.b16 %v1569, %v1567
    %v1662 = vpack.c.b16 %v1570, %v1568
    %v1663 = vpack.c.b16 %v1573, %v1571
    %v1664 = vpack.c.b16 %v1574, %v1572
    %v1665 = vpack.c.b16 %v1577, %v1575
    %v1666 = vpack.c.b16 %v1578, %v1576
    %v1667 = vpack.c.b16 %v1581, %v1579
    %v1668 = vpack.c.b16 %v1582, %v1580
    %v1669 = vpack.c.b16 %v1585, %v1583
    %v1670 = vpack.c.b16 %v1586, %v1584
    %v1671 = vpack.c.b16 %v1589, %v1587
    %v1672 = vpack.c.b16 %v1590, %v1588
    %v1673 = vpack.c.b16 %v1593, %v1591
    %v1674 = vpack.c.b16 %v1594, %v1592
    %v1675 = vpack.c.b16 %v1597, %v1595
    %v1676 = vpack.c.b16 %v1598, %v1596
    %v1677 = vpack.c.b16 %v1601, %v1599
    %v1678 = vpack.c.b16 %v1602, %v1600
    %v1679 = vpack.c.b16 %v1605, %v1603
    %v1680 = vpack.c.b16 %v1606, %v1604
    %v1681 = vpack.c.b16 %v1609, %v1607
    %v1682 = vpack.c.b16 %v1610, %v1608
    %v1683 = vpack.c.b16 %v1613, %v1611
    %v1684 = vpack.c.b16 %v1614, %v1612
    %v1685 = vpack.c.b16 %v1617, %v1615
    %v1686 = vpack.c.b16 %v1618, %v1616
    %v1687 = vpack.c.b16 %v1621, %v1619
    %v1688 = vpack.c.b16 %v1622, %v1620
    %v1689 = vpack.c.b16 %v1625, %v1623
    %v1690 = vpack.c.b16 %v1626, %v1624
    %v1691 = vpack.c.b16 %v1629, %v1627
    %v1692 = vpack.c.b16 %v1630, %v1628
    %v1693 = vpack.c.b16 %v1633, %v1631
    %v1694 = vpack.c.b16 %v1634, %v1632
    %v1695 = vpack.c.b16 %v1637, %v1635
    %v1696 = vpack.c.b16 %v1638, %v1636
    %v1697 = vpack.c.b16 %v1641, %v1639
    %v1698 = vpack.c.b16 %v1642, %v1640
    %v1699 = vpack.c.b16 %v1645, %v1643
    %v1700 = vpack.c.b16 %v1646, %v1644
    %v1701 = vpack.c.b16 %v1649, %v1647
    %v1702 = vpack.c.b16 %v1650, %v1648
    %v1703 = vpack.c.b16 %v1653, %v1651
    %v1704 = vpack.c.b16 %v1654, %v1652
    %v1705 = vpack.c.b16 %v1657, %v1655
    %v1706 = vpack.c.b16 %v1658, %v1656
    %1755 = vmatpush.bf16.msra.mxu0 %v1673
    %1756 = vmatpush.bf16.msra.mxu0 %v1671
    %1757 = vmatpush.bf16.msra.mxu0 %v1669
    %1758 = vmatpush.bf16.msra.mxu0 %v1667
    %1759 = vmatpush.bf16.msra.mxu0 %v1665
    %1760 = vmatpush.bf16.msra.mxu0 %v1663
    %1761 = vmatpush.bf16.msra.mxu0 %v1661
    %1762 = vmatpush.bf16.msra.mxu0 %v1659
    %1763 = vmatmul.bf16.gmra.mxu0 %v1445
    %v1764 = vpop.f32.mrf.mxu0
    %v1765 = vadd.f32 %v1511, %v1764
    %v1766 = vpop.f32.mrf.mxu0
    %v1767 = vadd.f32 %v1511, %v1766
    %1768 = vdwg.mxu0
    %1769 = vmatpush.bf16.msra.mxu0 %v1689
    %1770 = vmatpush.bf16.msra.mxu0 %v1687
    %1771 = vmatpush.bf16.msra.mxu0 %v1685
    %1772 = vmatpush.bf16.msra.mxu0 %v1683
    %1773 = vmatpush.bf16.msra.mxu0 %v1681
    %1774 = vmatpush.bf16.msra.mxu0 %v1679
    %1775 = vmatpush.bf16.msra.mxu0 %v1677
    %1776 = vmatpush.bf16.msra.mxu0 %v1675
    %1777 = vmatmul.bf16.gmra.mxu0 %v1451
    %v1778 = vpop.f32.mrf.mxu0
    %v1779 = vadd.f32 %v1765, %v1778
    %v1780 = vpop.f32.mrf.mxu0
    %v1781 = vadd.f32 %v1767, %v1780
    %1782 = vdwg.mxu0
    %1783 = vmatpush.bf16.msra.mxu0 %v1705
    %1784 = vmatpush.bf16.msra.mxu0 %v1703
    %1785 = vmatpush.bf16.msra.mxu0 %v1701
    %1786 = vmatpush.bf16.msra.mxu0 %v1699
    %1787 = vmatpush.bf16.msra.mxu0 %v1697
    %1788 = vmatpush.bf16.msra.mxu0 %v1695
    %1789 = vmatpush.bf16.msra.mxu0 %v1693
    %1790 = vmatpush.bf16.msra.mxu0 %v1691
    %1791 = vmatmul.bf16.gmra.mxu0 %v1457
    %v1792 = vpop.f32.mrf.mxu0
    %v1793 = vadd.f32 %v1779, %v1792
    %v1794 = vpop.f32.mrf.mxu0
    %v1795 = vadd.f32 %v1781, %v1794
    %1796 = vdwg.mxu0
    %1797 = vmatpush.bf16.msra.mxu0 %v1674
    %1798 = vmatpush.bf16.msra.mxu0 %v1672
    %1799 = vmatpush.bf16.msra.mxu0 %v1670
    %1800 = vmatpush.bf16.msra.mxu0 %v1668
    %1801 = vmatpush.bf16.msra.mxu0 %v1666
    %1802 = vmatpush.bf16.msra.mxu0 %v1664
    %1803 = vmatpush.bf16.msra.mxu0 %v1662
    %1804 = vmatpush.bf16.msra.mxu0 %v1660
    %1805 = vmatmul.bf16.gmra.mxu0 %v1445
    %v1806 = vpop.f32.mrf.mxu0
    %v1807 = vadd.f32 %v1512, %v1806
    %v1808 = vpop.f32.mrf.mxu0
    %v1809 = vadd.f32 %v1512, %v1808
    %1810 = vdwg.mxu0
    %1811 = vmatpush.bf16.msra.mxu0 %v1690
    %1812 = vmatpush.bf16.msra.mxu0 %v1688
    %1813 = vmatpush.bf16.msra.mxu0 %v1686
    %1814 = vmatpush.bf16.msra.mxu0 %v1684
    %1815 = vmatpush.bf16.msra.mxu0 %v1682
    %1816 = vmatpush.bf16.msra.mxu0 %v1680
    %1817 = vmatpush.bf16.msra.mxu0 %v1678
    %1818 = vmatpush.bf16.msra.mxu0 %v1676
    %1819 = vmatmul.bf16.gmra.mxu0 %v1451
    %v1820 = vpop.f32.mrf.mxu0
    %v1821 = vadd.f32 %v1807, %v1820
    %v1822 = vpop.f32.mrf.mxu0
    %v1823 = vadd.f32 %v1809, %v1822
    %1824 = vdwg.mxu0
    %1825 = vmatpush.bf16.msra.mxu0 %v1706
    %1826 = vmatpush.bf16.msra.mxu0 %v1704
    %1827 = vmatpush.bf16.msra.mxu0 %v1702
    %1828 = vmatpush.bf16.msra.mxu0 %v1700
    %1829 = vmatpush.bf16.msra.mxu0 %v1698
    %1830 = vmatpush.bf16.msra.mxu0 %v1696
    %1831 = vmatpush.bf16.msra.mxu0 %v1694
    %1832 = vmatpush.bf16.msra.mxu0 %v1692
    %1833 = vmatmul.bf16.gmra.mxu0 %v1457
    %v1834 = vpop.f32.mrf.mxu0
    %v1835 = vadd.f32 %v1821, %v1834
    %v1836 = vpop.f32.mrf.mxu0
    %v1837 = vadd.f32 %v1823, %v1836
    %1838 = vdwg.mxu0
    %v1839 = vmul.f32 %v1835, 0.5
    %v1840 = vmul.f32 %v1837, 0.5
    %v1841 = vtanh.pop %v1839
    %v1842 = vtanh.pop %v1840
    %v1843 = vadd.f32 %v1841, 1.0
    %v1844 = vadd.f32 %v1842, 1.0
    %v1845 = vmul.f32 %v1843, 0.5
    %v1846 = vmul.f32 %v1844, 0.5
    %v1847 = vmul.f32 %v1793, %v1845
    %v1848 = vmul.f32 %v1795, %v1846
    %v1849 = vadd.f32 %v1847, %v1419
    %v1850 = vadd.f32 %v1848, %v1420
    %v1851 = vmul.f32 %v1849, 0.70710677
    %v1852 = vmul.f32 %v1850, 0.70710677
    %v1853 = vrot.slane %v1851, 4
    %v1854 = vmax.f32 %v1851, %v1853
    %v1855 = vrot.slane %v1854, 2
    %v1856 = vmax.f32 %v1854, %v1855
    %v1857 = vrot.slane %v1856, 1
    %v1858 = vmax.f32 %v1856, %v1857
    %v1859 = vrot.slane %v1852, 4
    %v1860 = vmax.f32 %v1852, %v1859
    %v1861 = vrot.slane %v1860, 2
    %v1862 = vmax.f32 %v1860, %v1861
    %v1863 = vrot.slane %v1862, 1
    %v1864 = vmax.f32 %v1862, %v1863
    %vm1865 = vcmask 1040384
    %v1866 = vsel %vm1865, %v1858, %v1864
    %1867 = vst [vmem:[#allocation4] sm:$0x3] %v1866
    // Predicated region
    $region22: #{seq_conv_encoder.1} parent=1 // pred_check
      _
    $region23: #{seq_conv_encoder.1} parent=1 // pred_check_branch
      %1869 = sbr.rel (0) target = $region25
    $region24: #{seq_conv_encoder.1} parent=1 // pred_region
      %1871 = vsyncadd [#allocation5], 0
      %s1873 = sshll.u32 [#allocation4], 4
      %s1874 = int_to_ptr.vmem [resolvable:$true] %s1873
      %s1875 = sshll.u32 %s6, 4
      %s1876 = int_to_ptr.hbm [resolvable:$true] %s1875
      %1878 = dma.vmem_to_hbm [thread:$0]  %s1874, 32, %s1876, [#allocation5]
    $region25: #{seq_conv_encoder.1} parent=1 // pred_fallthru
      _
    // Predicated region
    $region26: #{seq_conv_encoder.1} parent=1 // pred_check
      _
    $region27: #{seq_conv_encoder.1} parent=1 // pred_check_branch
      %1880 = sbr.rel (0) target = $region29
    $region28: #{seq_conv_encoder.1} parent=1 // pred_region
      %1882 = dma.done [#allocation5], 32
    $region29: #{seq_conv_encoder.1} parent=1 // pred_fallthru
      _
    %1883 = vsyncpa [#allocation5], 1

</llo_original>
